<compile_context>
chip_gen: v7x
topology: tpu7x:2x2x1
jax: 0.10.0
libtpu: 0.0.40
codegen_flags: <defaults>
</compile_context>

<pallas_src>
import jax
import jax.numpy as jnp
import numpy as np
from jax.experimental import pallas as pl
from jax.experimental.pallas import tpu as pltpu

K = 5  # kernel_size of the causal conv (module default)


def _causal_conv1d_tanh_kernel(x_ref, w_ref, b_ref, o_ref):
    # x_ref: (N, C_in, L)        native PyTorch NCW layout (L on lanes)
    # w_ref: (C_out, C_in*K)     flat taps, C_out on sublanes
    # b_ref: (C_out, 1)
    # o_ref: (N, C_out, L)       native PyTorch output layout
    n, c_in, length = x_ref.shape
    c_out = o_ref.shape[1]
    k = w_ref.shape[1] // c_in

    x = x_ref[...].astype(jnp.float32)          # (N, C_in, L)
    w = w_ref[...].astype(jnp.float32)          # (C_out, C_in*K)

    # Causal left-pad of K-1 zeros along the lane (L) axis, in-register.
    x_pad = jnp.concatenate(
        [jnp.zeros((n, c_in, k - 1), jnp.float32), x], axis=2)   # (N, C_in, L+K-1)

    # Bias-initialised f32 accumulator: C_out on sublanes, L on lanes.
    acc = jnp.broadcast_to(
        b_ref[...].astype(jnp.float32)[None, :, :], (n, c_out, length))

    # K*C_in VPU broadcast multiply-adds (tap shifts are static lane slices).
    for j in range(k):
        xs = x_pad[:, :, j:j + length]                            # (N, C_in, L)
        for ci in range(c_in):
            x_tap = xs[:, ci:ci + 1, :]                           # (N, 1, L): sublane bcast
            w_tap = w[:, ci * k + j:ci * k + j + 1][None, :, :]   # (1, C_out, 1): lane bcast
            acc = acc + x_tap * w_tap

    o_ref[...] = jnp.tanh(acc).astype(o_ref.dtype)


def context_embedding_forward(x_ncl, weight, bias):
    """Causal Conv1d(kernel_size=K) + tanh, matching PyTorch `context_embedding`.

    x_ncl : (N, C_in, L) float32, PyTorch NCW layout
    weight: (C_out, C_in, K) float32, PyTorch Conv1d weight layout
    bias  : (C_out,) float32
    returns (N, C_out, L) float32
    """
    N, C_in, L = x_ncl.shape
    C_out, C_in_w, Kw = weight.shape
    assert C_in_w == C_in

    w_flat = weight.reshape(C_out, C_in * Kw)   # contiguous merge -> free reshape
    b_col = bias.reshape(C_out, 1)              # free reshape

    return pl.pallas_call(
        _causal_conv1d_tanh_kernel,
        out_shape=jax.ShapeDtypeStruct((N, C_out, L), jnp.float32),
        grid=(1,),                               # single step: work is overhead-bound
        in_specs=[
            pl.BlockSpec((N, C_in, L), lambda i: (0, 0, 0)),
            pl.BlockSpec((C_out, C_in * Kw), lambda i: (0, 0)),
            pl.BlockSpec((C_out, 1), lambda i: (0, 0)),
        ],
        out_specs=pl.BlockSpec((N, C_out, L), lambda i: (0, 0, 0)),
        compiler_params=pltpu.CompilerParams(
            dimension_semantics=("arbitrary",)),
    )(x_ncl, w_flat, b_col)


def _reference(x_ncl, weight, bias):
    """Pure-JAX reference of the same causal conv + tanh (NCW in, NCW out)."""
    N, C_in, L = x_ncl.shape
    C_out, _, Kw = weight.shape
    x_pad = jnp.pad(x_ncl, ((0, 0), (0, 0), (Kw - 1, 0)))
    acc = jnp.zeros((N, C_out, L), jnp.float32)
    for j in range(Kw):
        acc = acc + jnp.einsum("ncl,oc->nol", x_pad[:, :, j:j + L], weight[:, :, j])
    acc = acc + bias[None, :, None]
    return jnp.tanh(acc)


if __name__ == "__main__":
    # Module defaults: in_channels=1, embedding_size=256, k=5.
    N, C_in, L, C_out = 2, 1, 16, 256

    key = jax.random.PRNGKey(0)
    kx, kw, kb = jax.random.split(key, 3)

    x = jax.random.normal(kx, (N, C_in, L), dtype=jnp.float32)

    # Deterministic PyTorch-style Conv1d init, weight kept in PyTorch layout.
    bound = 1.0 / np.sqrt(C_in * K)
    weight = jax.random.uniform(kw, (C_out, C_in, K), dtype=jnp.float32,
                                minval=-bound, maxval=bound)
    bias = jax.random.uniform(kb, (C_out,), dtype=jnp.float32,
                              minval=-bound, maxval=bound)

    out = context_embedding_forward(x, weight, bias)
    out = jax.block_until_ready(out)

    ref = _reference(x, weight, bias)
    assert out.shape == (N, C_out, L)
    np.testing.assert_allclose(np.asarray(out), np.asarray(ref),
                               rtol=1e-5, atol=1e-5)

    print("KERNEL_OK")
</pallas_src>

<mosaic_0001>
module attributes {stable_mosaic.version = 11 : i64} {
  func.func @_causal_conv1d_tanh_kernel(%arg0: i32, %arg1: memref<2x1x16xf32, #tpu.memory_space<vmem>>, %arg2: memref<256x5xf32, #tpu.memory_space<vmem>>, %arg3: memref<256x1xf32, #tpu.memory_space<vmem>>, %arg4: memref<2x256x16xf32, #tpu.memory_space<vmem>>) attributes {dimension_semantics = [#tpu.dimension_semantics<arbitrary>], iteration_bounds = array<i64: 1>, scalar_prefetch = 0 : i64, scratch_operands = 0 : i64, tpu.core_type = #tpu.core_type<tc>, window_params = [{pipeline_mode = #tpu.pipeline_mode<synchronous>, transform_indices = @transform_0, window_bounds = array<i64: 2, 1, 16>}, {pipeline_mode = #tpu.pipeline_mode<synchronous>, transform_indices = @transform_1, window_bounds = array<i64: 256, 5>}, {pipeline_mode = #tpu.pipeline_mode<synchronous>, transform_indices = @transform_2, window_bounds = array<i64: 256, 1>}, {pipeline_mode = #tpu.pipeline_mode<synchronous>, transform_indices = @transform_3, window_bounds = array<i64: 2, 256, 16>}]} {
    %c0 = arith.constant 0 : index
    %c0_0 = arith.constant 0 : index
    %c0_1 = arith.constant 0 : index
    %0 = vector.load %arg1[%c0, %c0_0, %c0_1] : memref<2x1x16xf32, #tpu.memory_space<vmem>>, vector<2x1x16xf32>
    %c0_2 = arith.constant 0 : index
    %c0_3 = arith.constant 0 : index
    %1 = vector.load %arg2[%c0_2, %c0_3] : memref<256x5xf32, #tpu.memory_space<vmem>>, vector<256x5xf32>
    %cst = arith.constant 0.000000e+00 : f32
    %2 = vector.broadcast %cst : f32 to vector<2x1x4xf32>
    %3 = tpu.concatenate %2, %0 in 2 : vector<2x1x4xf32>, vector<2x1x16xf32> -> vector<2x1x20xf32>
    %c0_4 = arith.constant 0 : index
    %c0_5 = arith.constant 0 : index
    %4 = vector.load %arg3[%c0_4, %c0_5] : memref<256x1xf32, #tpu.memory_space<vmem>>, vector<256x1xf32>
    %5 = vector.shape_cast %4 : vector<256x1xf32> to vector<1x256x1xf32>
    %6 = vector.shape_cast %5 : vector<1x256x1xf32> to vector<1x256x1xf32>
    %7 = vector.broadcast %6 : vector<1x256x1xf32> to vector<2x256x16xf32>
    %8 = vector.extract_strided_slice %3 {offsets = [0, 0, 0], sizes = [2, 1, 16], strides = [1, 1, 1]} : vector<2x1x20xf32> to vector<2x1x16xf32>
    %9 = vector.extract_strided_slice %1 {offsets = [0, 0], sizes = [256, 1], strides = [1, 1]} : vector<256x5xf32> to vector<256x1xf32>
    %10 = vector.shape_cast %9 : vector<256x1xf32> to vector<1x256x1xf32>
    %11 = vector.broadcast %8 : vector<2x1x16xf32> to vector<2x256x16xf32>
    %12 = vector.broadcast %10 : vector<1x256x1xf32> to vector<2x256x16xf32>
    %13 = arith.mulf %11, %12 : vector<2x256x16xf32>
    %14 = arith.addf %7, %13 : vector<2x256x16xf32>
    %15 = vector.extract_strided_slice %3 {offsets = [0, 0, 1], sizes = [2, 1, 16], strides = [1, 1, 1]} : vector<2x1x20xf32> to vector<2x1x16xf32>
    %16 = vector.extract_strided_slice %1 {offsets = [0, 1], sizes = [256, 1], strides = [1, 1]} : vector<256x5xf32> to vector<256x1xf32>
    %17 = vector.shape_cast %16 : vector<256x1xf32> to vector<1x256x1xf32>
    %18 = vector.broadcast %15 : vector<2x1x16xf32> to vector<2x256x16xf32>
    %19 = vector.broadcast %17 : vector<1x256x1xf32> to vector<2x256x16xf32>
    %20 = arith.mulf %18, %19 : vector<2x256x16xf32>
    %21 = arith.addf %14, %20 : vector<2x256x16xf32>
    %22 = vector.extract_strided_slice %3 {offsets = [0, 0, 2], sizes = [2, 1, 16], strides = [1, 1, 1]} : vector<2x1x20xf32> to vector<2x1x16xf32>
    %23 = vector.extract_strided_slice %1 {offsets = [0, 2], sizes = [256, 1], strides = [1, 1]} : vector<256x5xf32> to vector<256x1xf32>
    %24 = vector.shape_cast %23 : vector<256x1xf32> to vector<1x256x1xf32>
    %25 = vector.broadcast %22 : vector<2x1x16xf32> to vector<2x256x16xf32>
    %26 = vector.broadcast %24 : vector<1x256x1xf32> to vector<2x256x16xf32>
    %27 = arith.mulf %25, %26 : vector<2x256x16xf32>
    %28 = arith.addf %21, %27 : vector<2x256x16xf32>
    %29 = vector.extract_strided_slice %3 {offsets = [0, 0, 3], sizes = [2, 1, 16], strides = [1, 1, 1]} : vector<2x1x20xf32> to vector<2x1x16xf32>
    %30 = vector.extract_strided_slice %1 {offsets = [0, 3], sizes = [256, 1], strides = [1, 1]} : vector<256x5xf32> to vector<256x1xf32>
    %31 = vector.shape_cast %30 : vector<256x1xf32> to vector<1x256x1xf32>
    %32 = vector.broadcast %29 : vector<2x1x16xf32> to vector<2x256x16xf32>
    %33 = vector.broadcast %31 : vector<1x256x1xf32> to vector<2x256x16xf32>
    %34 = arith.mulf %32, %33 : vector<2x256x16xf32>
    %35 = arith.addf %28, %34 : vector<2x256x16xf32>
    %36 = vector.extract_strided_slice %3 {offsets = [0, 0, 4], sizes = [2, 1, 16], strides = [1, 1, 1]} : vector<2x1x20xf32> to vector<2x1x16xf32>
    %37 = vector.extract_strided_slice %1 {offsets = [0, 4], sizes = [256, 1], strides = [1, 1]} : vector<256x5xf32> to vector<256x1xf32>
    %38 = vector.shape_cast %37 : vector<256x1xf32> to vector<1x256x1xf32>
    %39 = vector.broadcast %36 : vector<2x1x16xf32> to vector<2x256x16xf32>
    %40 = vector.broadcast %38 : vector<1x256x1xf32> to vector<2x256x16xf32>
    %41 = arith.mulf %39, %40 : vector<2x256x16xf32>
    %42 = arith.addf %35, %41 : vector<2x256x16xf32>
    %43 = math.tanh %42 : vector<2x256x16xf32>
    %c0_6 = arith.constant 0 : index
    %c0_7 = arith.constant 0 : index
    %c0_8 = arith.constant 0 : index
    %44 = vector.load %arg4[%c0_6, %c0_7, %c0_8] : memref<2x256x16xf32, #tpu.memory_space<vmem>>, vector<2x256x16xf32>
    tpu.vector_store %arg4[%c0_6, %c0_7, %c0_8], %43 {strides = array<i32>} : memref<2x256x16xf32, #tpu.memory_space<vmem>>, vector<2x256x16xf32>,
    return
  }
  func.func @transform_0(%arg0: i32) -> (i32, i32, i32) {
    %c0_i32 = arith.constant 0 : i32
    %c0_i32_0 = arith.constant 0 : i32
    %c0_i32_1 = arith.constant 0 : i32
    %c0_i32_2 = arith.constant 0 : i32
    return %c0_i32, %c0_i32_0, %c0_i32_1 : i32, i32, i32
  }
  func.func @transform_1(%arg0: i32) -> (i32, i32) {
    %c0_i32 = arith.constant 0 : i32
    %c0_i32_0 = arith.constant 0 : i32
    %c0_i32_1 = arith.constant 0 : i32
    return %c0_i32, %c0_i32_0 : i32, i32
  }
  func.func @transform_2(%arg0: i32) -> (i32, i32) {
    %c0_i32 = arith.constant 0 : i32
    %c0_i32_0 = arith.constant 0 : i32
    %c0_i32_1 = arith.constant 0 : i32
    return %c0_i32, %c0_i32_0 : i32, i32
  }
  func.func @transform_3(%arg0: i32) -> (i32, i32, i32) {
    %c0_i32 = arith.constant 0 : i32
    %c0_i32_0 = arith.constant 0 : i32
    %c0_i32_1 = arith.constant 0 : i32
    %c0_i32_2 = arith.constant 0 : i32
    return %c0_i32, %c0_i32_0, %c0_i32_1 : i32, i32, i32
  }
}

</mosaic_0001>

<llo_original>
// kernel: tpu_custom_call.1
$region0: #{tpu_custom_call.1}
  #allocation0 [shape = 'u32[]', space=smem, size = 0x4, offset = 0x4, fixed_abs, tag = 'smem constant byte address 0x4 - core index']
  #allocation1 [shape = 'u32[144,128]{1,0:T(1,128)}', space=vmem, size = 0x12000, scoped, tag = 'internal scratch']
  %s0 = inlined_call_operand.vmem [shape: f32[2,1,16], index: 0, kind: input, shape index: {}]
  %s1 = inlined_call_operand.vmem [shape: f32[256,5], index: 1, kind: input, shape index: {}]
  %s2 = inlined_call_operand.vmem [shape: f32[256,1], index: 2, kind: input, shape index: {}]
  %s3 = inlined_call_operand.vmem [shape: f32[2,256,16], index: 3, kind: output, shape index: {}]
  %s4 = sld [smem:[#allocation0]]
  $region22: #{tpu_custom_call.1} parent=0
    _
  %s6 = ssub.s32 1, %s4
  %s7 = scalar_select 0, %s6, %s4
  // Predicated region
  $region2: #{tpu_custom_call.1} parent=0 // pred_check
    _
  $region3: #{tpu_custom_call.1} parent=0 // pred_check_branch
    %9 = sbr.rel (0) target = $region5
  $region4: #{tpu_custom_call.1} parent=0 // pred_region
    _
  $region5: #{tpu_custom_call.1} parent=0 // pred_fallthru
    _
  // Predicated region
  $region6: #{tpu_custom_call.1} parent=0 // pred_check
    _
  $region7: #{tpu_custom_call.1} parent=0 // pred_check_branch
    %11 = sbr.rel (0) target = $region9
  $region8: #{tpu_custom_call.1} parent=0 // pred_region
    _
  $region9: #{tpu_custom_call.1} parent=0 // pred_fallthru
    _
  // Predicated region
  $region10: #{tpu_custom_call.1} parent=0 // pred_check
    _
  $region11: #{tpu_custom_call.1} parent=0 // pred_check_branch
    %13 = sbr.rel (0) target = $region13
  $region12: #{tpu_custom_call.1} parent=0 // pred_region
    _
  $region13: #{tpu_custom_call.1} parent=0 // pred_fallthru
    _
  %v14 = vld [vmem:[%s0] sm:$0x1]
  %v15 = vld [vmem:[%s0 + $0x1] sm:$0x1]
  %v16 = vld [vmem:[%s1] sm:$0xff]
  %v17 = vld [vmem:[%s1 + $0x8] sm:$0xff]
  %v18 = vld [vmem:[%s1 + $0x10] sm:$0xff]
  %v19 = vld [vmem:[%s1 + $0x18] sm:$0xff]
  %v20 = vld [vmem:[%s1 + $0x20] sm:$0xff]
  %v21 = vld [vmem:[%s1 + $0x28] sm:$0xff]
  %v22 = vld [vmem:[%s1 + $0x30] sm:$0xff]
  %v23 = vld [vmem:[%s1 + $0x38] sm:$0xff]
  %v24 = vld [vmem:[%s1 + $0x40] sm:$0xff]
  %v25 = vld [vmem:[%s1 + $0x48] sm:$0xff]
  %v26 = vld [vmem:[%s1 + $0x50] sm:$0xff]
  %v27 = vld [vmem:[%s1 + $0x58] sm:$0xff]
  %v28 = vld [vmem:[%s1 + $0x60] sm:$0xff]
  %v29 = vld [vmem:[%s1 + $0x68] sm:$0xff]
  %v30 = vld [vmem:[%s1 + $0x70] sm:$0xff]
  %v31 = vld [vmem:[%s1 + $0x78] sm:$0xff]
  %v32 = vld [vmem:[%s1 + $0x80] sm:$0xff]
  %v33 = vld [vmem:[%s1 + $0x88] sm:$0xff]
  %v34 = vld [vmem:[%s1 + $0x90] sm:$0xff]
  %v35 = vld [vmem:[%s1 + $0x98] sm:$0xff]
  %v36 = vld [vmem:[%s1 + $0xa0] sm:$0xff]
  %v37 = vld [vmem:[%s1 + $0xa8] sm:$0xff]
  %v38 = vld [vmem:[%s1 + $0xb0] sm:$0xff]
  %v39 = vld [vmem:[%s1 + $0xb8] sm:$0xff]
  %v40 = vld [vmem:[%s1 + $0xc0] sm:$0xff]
  %v41 = vld [vmem:[%s1 + $0xc8] sm:$0xff]
  %v42 = vld [vmem:[%s1 + $0xd0] sm:$0xff]
  %v43 = vld [vmem:[%s1 + $0xd8] sm:$0xff]
  %v44 = vld [vmem:[%s1 + $0xe0] sm:$0xff]
  %v45 = vld [vmem:[%s1 + $0xe8] sm:$0xff]
  %v46 = vld [vmem:[%s1 + $0xf0] sm:$0xff]
  %v47 = vld [vmem:[%s1 + $0xf8] sm:$0xff]
  %v50 = vlaneseq
  %v51 = vshrl.u32 %v50, 7
  %v52 = vsub.s32 0, %v51
  %v53 = vrot.slane %v14, %v52
  %v54 = vlaneseq
  %v55 = vshrl.u32 %v54, 7
  %v56 = vsub.s32 0, %v55
  %v57 = vrot.slane %v15, %v56
  %58 = vrot.lane.b32.xlu0 %v53, 4
  %v59 = vpop.permute.xlu0 %58
  %60 = vrot.lane.b32.xlu0 %v57, 4
  %v61 = vpop.permute.xlu0 %60
  %vm64 = vcmask 31744
  %v65 = vsel %vm64, 0.0, %v59
  %v66 = vsel %vm64, 0.0, %v61
  %v67 = vld [vmem:[%s2] sm:$0xff]
  %v68 = vld [vmem:[%s2 + $0x8] sm:$0xff]
  %v69 = vld [vmem:[%s2 + $0x10] sm:$0xff]
  %v70 = vld [vmem:[%s2 + $0x18] sm:$0xff]
  %v71 = vld [vmem:[%s2 + $0x20] sm:$0xff]
  %v72 = vld [vmem:[%s2 + $0x28] sm:$0xff]
  %v73 = vld [vmem:[%s2 + $0x30] sm:$0xff]
  %v74 = vld [vmem:[%s2 + $0x38] sm:$0xff]
  %v75 = vld [vmem:[%s2 + $0x40] sm:$0xff]
  %v76 = vld [vmem:[%s2 + $0x48] sm:$0xff]
  %v77 = vld [vmem:[%s2 + $0x50] sm:$0xff]
  %v78 = vld [vmem:[%s2 + $0x58] sm:$0xff]
  %v79 = vld [vmem:[%s2 + $0x60] sm:$0xff]
  %v80 = vld [vmem:[%s2 + $0x68] sm:$0xff]
  %v81 = vld [vmem:[%s2 + $0x70] sm:$0xff]
  %v82 = vld [vmem:[%s2 + $0x78] sm:$0xff]
  %v83 = vld [vmem:[%s2 + $0x80] sm:$0xff]
  %v84 = vld [vmem:[%s2 + $0x88] sm:$0xff]
  %v85 = vld [vmem:[%s2 + $0x90] sm:$0xff]
  %v86 = vld [vmem:[%s2 + $0x98] sm:$0xff]
  %v87 = vld [vmem:[%s2 + $0xa0] sm:$0xff]
  %v88 = vld [vmem:[%s2 + $0xa8] sm:$0xff]
  %v89 = vld [vmem:[%s2 + $0xb0] sm:$0xff]
  %v90 = vld [vmem:[%s2 + $0xb8] sm:$0xff]
  %v91 = vld [vmem:[%s2 + $0xc0] sm:$0xff]
  %v92 = vld [vmem:[%s2 + $0xc8] sm:$0xff]
  %v93 = vld [vmem:[%s2 + $0xd0] sm:$0xff]
  %v94 = vld [vmem:[%s2 + $0xd8] sm:$0xff]
  %v95 = vld [vmem:[%s2 + $0xe0] sm:$0xff]
  %v96 = vld [vmem:[%s2 + $0xe8] sm:$0xff]
  %v97 = vld [vmem:[%s2 + $0xf0] sm:$0xff]
  %v98 = vld [vmem:[%s2 + $0xf8] sm:$0xff]
  %100 = vset.pattern.permute.xlu0 0
  %101 = vperm.xlu0 %100, %v67
  %v102 = vpop.permute.xlu0 %101
  %105 = vset.pattern.permute.xlu0 0
  %106 = vperm.xlu0 %105, %v68
  %v107 = vpop.permute.xlu0 %106
  %110 = vset.pattern.permute.xlu0 0
  %111 = vperm.xlu0 %110, %v69
  %v112 = vpop.permute.xlu0 %111
  %115 = vset.pattern.permute.xlu0 0
  %116 = vperm.xlu0 %115, %v70
  %v117 = vpop.permute.xlu0 %116
  %120 = vset.pattern.permute.xlu0 0
  %121 = vperm.xlu0 %120, %v71
  %v122 = vpop.permute.xlu0 %121
  %125 = vset.pattern.permute.xlu0 0
  %126 = vperm.xlu0 %125, %v72
  %v127 = vpop.permute.xlu0 %126
  %130 = vset.pattern.permute.xlu0 0
  %131 = vperm.xlu0 %130, %v73
  %v132 = vpop.permute.xlu0 %131
  %135 = vset.pattern.permute.xlu0 0
  %136 = vperm.xlu0 %135, %v74
  %v137 = vpop.permute.xlu0 %136
  %140 = vset.pattern.permute.xlu0 0
  %141 = vperm.xlu0 %140, %v75
  %v142 = vpop.permute.xlu0 %141
  %145 = vset.pattern.permute.xlu0 0
  %146 = vperm.xlu0 %145, %v76
  %v147 = vpop.permute.xlu0 %146
  %150 = vset.pattern.permute.xlu0 0
  %151 = vperm.xlu0 %150, %v77
  %v152 = vpop.permute.xlu0 %151
  %155 = vset.pattern.permute.xlu0 0
  %156 = vperm.xlu0 %155, %v78
  %v157 = vpop.permute.xlu0 %156
  %160 = vset.pattern.permute.xlu0 0
  %161 = vperm.xlu0 %160, %v79
  %v162 = vpop.permute.xlu0 %161
  %165 = vset.pattern.permute.xlu0 0
  %166 = vperm.xlu0 %165, %v80
  %v167 = vpop.permute.xlu0 %166
  %170 = vset.pattern.permute.xlu0 0
  %171 = vperm.xlu0 %170, %v81
  %v172 = vpop.permute.xlu0 %171
  %175 = vset.pattern.permute.xlu0 0
  %176 = vperm.xlu0 %175, %v82
  %v177 = vpop.permute.xlu0 %176
  %180 = vset.pattern.permute.xlu0 0
  %181 = vperm.xlu0 %180, %v83
  %v182 = vpop.permute.xlu0 %181
  %185 = vset.pattern.permute.xlu0 0
  %186 = vperm.xlu0 %185, %v84
  %v187 = vpop.permute.xlu0 %186
  %190 = vset.pattern.permute.xlu0 0
  %191 = vperm.xlu0 %190, %v85
  %v192 = vpop.permute.xlu0 %191
  %195 = vset.pattern.permute.xlu0 0
  %196 = vperm.xlu0 %195, %v86
  %v197 = vpop.permute.xlu0 %196
  %200 = vset.pattern.permute.xlu0 0
  %201 = vperm.xlu0 %200, %v87
  %v202 = vpop.permute.xlu0 %201
  %205 = vset.pattern.permute.xlu0 0
  %206 = vperm.xlu0 %205, %v88
  %v207 = vpop.permute.xlu0 %206
  %210 = vset.pattern.permute.xlu0 0
  %211 = vperm.xlu0 %210, %v89
  %v212 = vpop.permute.xlu0 %211
  %215 = vset.pattern.permute.xlu0 0
  %216 = vperm.xlu0 %215, %v90
  %v217 = vpop.permute.xlu0 %216
  %220 = vset.pattern.permute.xlu0 0
  %221 = vperm.xlu0 %220, %v91
  %v222 = vpop.permute.xlu0 %221
  %225 = vset.pattern.permute.xlu0 0
  %226 = vperm.xlu0 %225, %v92
  %v227 = vpop.permute.xlu0 %226
  %230 = vset.pattern.permute.xlu0 0
  %231 = vperm.xlu0 %230, %v93
  %v232 = vpop.permute.xlu0 %231
  %235 = vset.pattern.permute.xlu0 0
  %236 = vperm.xlu0 %235, %v94
  %v237 = vpop.permute.xlu0 %236
  %240 = vset.pattern.permute.xlu0 0
  %241 = vperm.xlu0 %240, %v95
  %v242 = vpop.permute.xlu0 %241
  %245 = vset.pattern.permute.xlu0 0
  %246 = vperm.xlu0 %245, %v96
  %v247 = vpop.permute.xlu0 %246
  %250 = vset.pattern.permute.xlu0 0
  %251 = vperm.xlu0 %250, %v97
  %v252 = vpop.permute.xlu0 %251
  %255 = vset.pattern.permute.xlu0 0
  %256 = vperm.xlu0 %255, %v98
  %v257 = vpop.permute.xlu0 %256
  %v259 = vlaneseq
  %v260 = vshrl.u32 %v259, 7
  %v261 = vsub.s32 0, %v260
  %v262 = vrot.slane %v65, %v261
  %v263 = vlaneseq
  %v264 = vshrl.u32 %v263, 7
  %v265 = vsub.s32 0, %v264
  %v266 = vrot.slane %v66, %v265
  %268 = vset.pattern.permute.xlu0 0
  %269 = vperm.xlu0 %268, %v16
  %v270 = vpop.permute.xlu0 %269
  %273 = vset.pattern.permute.xlu0 0
  %274 = vperm.xlu0 %273, %v17
  %v275 = vpop.permute.xlu0 %274
  %278 = vset.pattern.permute.xlu0 0
  %279 = vperm.xlu0 %278, %v18
  %v280 = vpop.permute.xlu0 %279
  %283 = vset.pattern.permute.xlu0 0
  %284 = vperm.xlu0 %283, %v19
  %v285 = vpop.permute.xlu0 %284
  %288 = vset.pattern.permute.xlu0 0
  %289 = vperm.xlu0 %288, %v20
  %v290 = vpop.permute.xlu0 %289
  %293 = vset.pattern.permute.xlu0 0
  %294 = vperm.xlu0 %293, %v21
  %v295 = vpop.permute.xlu0 %294
  %298 = vset.pattern.permute.xlu0 0
  %299 = vperm.xlu0 %298, %v22
  %v300 = vpop.permute.xlu0 %299
  %303 = vset.pattern.permute.xlu0 0
  %304 = vperm.xlu0 %303, %v23
  %v305 = vpop.permute.xlu0 %304
  %308 = vset.pattern.permute.xlu0 0
  %309 = vperm.xlu0 %308, %v24
  %v310 = vpop.permute.xlu0 %309
  %313 = vset.pattern.permute.xlu0 0
  %314 = vperm.xlu0 %313, %v25
  %v315 = vpop.permute.xlu0 %314
  %318 = vset.pattern.permute.xlu0 0
  %319 = vperm.xlu0 %318, %v26
  %v320 = vpop.permute.xlu0 %319
  %323 = vset.pattern.permute.xlu0 0
  %324 = vperm.xlu0 %323, %v27
  %v325 = vpop.permute.xlu0 %324
  %328 = vset.pattern.permute.xlu0 0
  %329 = vperm.xlu0 %328, %v28
  %v330 = vpop.permute.xlu0 %329
  %333 = vset.pattern.permute.xlu0 0
  %334 = vperm.xlu0 %333, %v29
  %v335 = vpop.permute.xlu0 %334
  %338 = vset.pattern.permute.xlu0 0
  %339 = vperm.xlu0 %338, %v30
  %v340 = vpop.permute.xlu0 %339
  %343 = vset.pattern.permute.xlu0 0
  %344 = vperm.xlu0 %343, %v31
  %v345 = vpop.permute.xlu0 %344
  %348 = vset.pattern.permute.xlu0 0
  %349 = vperm.xlu0 %348, %v32
  %v350 = vpop.permute.xlu0 %349
  %353 = vset.pattern.permute.xlu0 0
  %354 = vperm.xlu0 %353, %v33
  %v355 = vpop.permute.xlu0 %354
  %358 = vset.pattern.permute.xlu0 0
  %359 = vperm.xlu0 %358, %v34
  %v360 = vpop.permute.xlu0 %359
  %363 = vset.pattern.permute.xlu0 0
  %364 = vperm.xlu0 %363, %v35
  %v365 = vpop.permute.xlu0 %364
  %368 = vset.pattern.permute.xlu0 0
  %369 = vperm.xlu0 %368, %v36
  %v370 = vpop.permute.xlu0 %369
  %373 = vset.pattern.permute.xlu0 0
  %374 = vperm.xlu0 %373, %v37
  %v375 = vpop.permute.xlu0 %374
  %378 = vset.pattern.permute.xlu0 0
  %379 = vperm.xlu0 %378, %v38
  %v380 = vpop.permute.xlu0 %379
  %383 = vset.pattern.permute.xlu0 0
  %384 = vperm.xlu0 %383, %v39
  %v385 = vpop.permute.xlu0 %384
  %388 = vset.pattern.permute.xlu0 0
  %389 = vperm.xlu0 %388, %v40
  %v390 = vpop.permute.xlu0 %389
  %393 = vset.pattern.permute.xlu0 0
  %394 = vperm.xlu0 %393, %v41
  %v395 = vpop.permute.xlu0 %394
  %398 = vset.pattern.permute.xlu0 0
  %399 = vperm.xlu0 %398, %v42
  %v400 = vpop.permute.xlu0 %399
  %403 = vset.pattern.permute.xlu0 0
  %404 = vperm.xlu0 %403, %v43
  %v405 = vpop.permute.xlu0 %404
  %408 = vset.pattern.permute.xlu0 0
  %409 = vperm.xlu0 %408, %v44
  %v410 = vpop.permute.xlu0 %409
  %413 = vset.pattern.permute.xlu0 0
  %414 = vperm.xlu0 %413, %v45
  %v415 = vpop.permute.xlu0 %414
  %418 = vset.pattern.permute.xlu0 0
  %419 = vperm.xlu0 %418, %v46
  %v420 = vpop.permute.xlu0 %419
  %423 = vset.pattern.permute.xlu0 0
  %424 = vperm.xlu0 %423, %v47
  %v425 = vpop.permute.xlu0 %424
  %v427 = vmul.f32 %v262, %v270
  %v428 = vmul.f32 %v262, %v275
  %v429 = vmul.f32 %v262, %v280
  %v430 = vmul.f32 %v262, %v285
  %v431 = vmul.f32 %v262, %v290
  %v432 = vmul.f32 %v262, %v295
  %v433 = vmul.f32 %v262, %v300
  %v434 = vmul.f32 %v262, %v305
  %v435 = vmul.f32 %v262, %v310
  %v436 = vmul.f32 %v262, %v315
  %v437 = vmul.f32 %v262, %v320
  %v438 = vmul.f32 %v262, %v325
  %v439 = vmul.f32 %v262, %v330
  %v440 = vmul.f32 %v262, %v335
  %v441 = vmul.f32 %v262, %v340
  %v442 = vmul.f32 %v262, %v345
  %v443 = vmul.f32 %v262, %v350
  %v444 = vmul.f32 %v262, %v355
  %v445 = vmul.f32 %v262, %v360
  %v446 = vmul.f32 %v262, %v365
  %v447 = vmul.f32 %v262, %v370
  %v448 = vmul.f32 %v262, %v375
  %v449 = vmul.f32 %v262, %v380
  %v450 = vmul.f32 %v262, %v385
  %v451 = vmul.f32 %v262, %v390
  %v452 = vmul.f32 %v262, %v395
  %v453 = vmul.f32 %v262, %v400
  %v454 = vmul.f32 %v262, %v405
  %v455 = vmul.f32 %v262, %v410
  %v456 = vmul.f32 %v262, %v415
  %v457 = vmul.f32 %v262, %v420
  %v458 = vmul.f32 %v262, %v425
  %v459 = vmul.f32 %v266, %v270
  %v460 = vmul.f32 %v266, %v275
  %v461 = vmul.f32 %v266, %v280
  %v462 = vmul.f32 %v266, %v285
  %v463 = vmul.f32 %v266, %v290
  %v464 = vmul.f32 %v266, %v295
  %v465 = vmul.f32 %v266, %v300
  %v466 = vmul.f32 %v266, %v305
  %v467 = vmul.f32 %v266, %v310
  %v468 = vmul.f32 %v266, %v315
  %v469 = vmul.f32 %v266, %v320
  %v470 = vmul.f32 %v266, %v325
  %v471 = vmul.f32 %v266, %v330
  %v472 = vmul.f32 %v266, %v335
  %v473 = vmul.f32 %v266, %v340
  %v474 = vmul.f32 %v266, %v345
  %v475 = vmul.f32 %v266, %v350
  %v476 = vmul.f32 %v266, %v355
  %v477 = vmul.f32 %v266, %v360
  %v478 = vmul.f32 %v266, %v365
  %v479 = vmul.f32 %v266, %v370
  %v480 = vmul.f32 %v266, %v375
  %v481 = vmul.f32 %v266, %v380
  %v482 = vmul.f32 %v266, %v385
  %v483 = vmul.f32 %v266, %v390
  %v484 = vmul.f32 %v266, %v395
  %v485 = vmul.f32 %v266, %v400
  %v486 = vmul.f32 %v266, %v405
  %v487 = vmul.f32 %v266, %v410
  %v488 = vmul.f32 %v266, %v415
  %v489 = vmul.f32 %v266, %v420
  %v490 = vmul.f32 %v266, %v425
  %v491 = vadd.f32 %v102, %v427
  %v492 = vadd.f32 %v107, %v428
  %v493 = vadd.f32 %v112, %v429
  %v494 = vadd.f32 %v117, %v430
  %v495 = vadd.f32 %v122, %v431
  %v496 = vadd.f32 %v127, %v432
  %v497 = vadd.f32 %v132, %v433
  %v498 = vadd.f32 %v137, %v434
  %v499 = vadd.f32 %v142, %v435
  %v500 = vadd.f32 %v147, %v436
  %v501 = vadd.f32 %v152, %v437
  %v502 = vadd.f32 %v157, %v438
  %v503 = vadd.f32 %v162, %v439
  %v504 = vadd.f32 %v167, %v440
  %v505 = vadd.f32 %v172, %v441
  %v506 = vadd.f32 %v177, %v442
  %v507 = vadd.f32 %v182, %v443
  %v508 = vadd.f32 %v187, %v444
  %v509 = vadd.f32 %v192, %v445
  %v510 = vadd.f32 %v197, %v446
  %v511 = vadd.f32 %v202, %v447
  %v512 = vadd.f32 %v207, %v448
  %v513 = vadd.f32 %v212, %v449
  %v514 = vadd.f32 %v217, %v450
  %v515 = vadd.f32 %v222, %v451
  %v516 = vadd.f32 %v227, %v452
  %v517 = vadd.f32 %v232, %v453
  %v518 = vadd.f32 %v237, %v454
  %v519 = vadd.f32 %v242, %v455
  %v520 = vadd.f32 %v247, %v456
  %v521 = vadd.f32 %v252, %v457
  %v522 = vadd.f32 %v257, %v458
  %v523 = vadd.f32 %v102, %v459
  %v524 = vadd.f32 %v107, %v460
  %v525 = vadd.f32 %v112, %v461
  %v526 = vadd.f32 %v117, %v462
  %v527 = vadd.f32 %v122, %v463
  %v528 = vadd.f32 %v127, %v464
  %v529 = vadd.f32 %v132, %v465
  %v530 = vadd.f32 %v137, %v466
  %v531 = vadd.f32 %v142, %v467
  %v532 = vadd.f32 %v147, %v468
  %v533 = vadd.f32 %v152, %v469
  %v534 = vadd.f32 %v157, %v470
  %v535 = vadd.f32 %v162, %v471
  %v536 = vadd.f32 %v167, %v472
  %v537 = vadd.f32 %v172, %v473
  %v538 = vadd.f32 %v177, %v474
  %v539 = vadd.f32 %v182, %v475
  %v540 = vadd.f32 %v187, %v476
  %v541 = vadd.f32 %v192, %v477
  %v542 = vadd.f32 %v197, %v478
  %v543 = vadd.f32 %v202, %v479
  %v544 = vadd.f32 %v207, %v480
  %v545 = vadd.f32 %v212, %v481
  %v546 = vadd.f32 %v217, %v482
  %v547 = vadd.f32 %v222, %v483
  %v548 = vadd.f32 %v227, %v484
  %v549 = vadd.f32 %v232, %v485
  %v550 = vadd.f32 %v237, %v486
  %v551 = vadd.f32 %v242, %v487
  %v552 = vadd.f32 %v247, %v488
  %v553 = vadd.f32 %v252, %v489
  %v554 = vadd.f32 %v257, %v490
  %555 = vset.pattern.permute.xlu0 1
  %556 = vperm.xlu0 %555, %v16
  %v557 = vpop.permute.xlu0 %556
  %559 = vset.pattern.permute.xlu0 1
  %560 = vperm.xlu0 %559, %v17
  %v561 = vpop.permute.xlu0 %560
  %563 = vset.pattern.permute.xlu0 1
  %564 = vperm.xlu0 %563, %v18
  %v565 = vpop.permute.xlu0 %564
  %567 = vset.pattern.permute.xlu0 1
  %568 = vperm.xlu0 %567, %v19
  %v569 = vpop.permute.xlu0 %568
  %571 = vset.pattern.permute.xlu0 1
  %572 = vperm.xlu0 %571, %v20
  %v573 = vpop.permute.xlu0 %572
  %575 = vset.pattern.permute.xlu0 1
  %576 = vperm.xlu0 %575, %v21
  %v577 = vpop.permute.xlu0 %576
  %579 = vset.pattern.permute.xlu0 1
  %580 = vperm.xlu0 %579, %v22
  %v581 = vpop.permute.xlu0 %580
  %583 = vset.pattern.permute.xlu0 1
  %584 = vperm.xlu0 %583, %v23
  %v585 = vpop.permute.xlu0 %584
  %587 = vset.pattern.permute.xlu0 1
  %588 = vperm.xlu0 %587, %v24
  %v589 = vpop.permute.xlu0 %588
  %591 = vset.pattern.permute.xlu0 1
  %592 = vperm.xlu0 %591, %v25
  %v593 = vpop.permute.xlu0 %592
  %595 = vset.pattern.permute.xlu0 1
  %596 = vperm.xlu0 %595, %v26
  %v597 = vpop.permute.xlu0 %596
  %599 = vset.pattern.permute.xlu0 1
  %600 = vperm.xlu0 %599, %v27
  %v601 = vpop.permute.xlu0 %600
  %603 = vset.pattern.permute.xlu0 1
  %604 = vperm.xlu0 %603, %v28
  %v605 = vpop.permute.xlu0 %604
  %607 = vset.pattern.permute.xlu0 1
  %608 = vperm.xlu0 %607, %v29
  %v609 = vpop.permute.xlu0 %608
  %611 = vset.pattern.permute.xlu0 1
  %612 = vperm.xlu0 %611, %v30
  %v613 = vpop.permute.xlu0 %612
  %615 = vset.pattern.permute.xlu0 1
  %616 = vperm.xlu0 %615, %v31
  %v617 = vpop.permute.xlu0 %616
  %619 = vset.pattern.permute.xlu0 1
  %620 = vperm.xlu0 %619, %v32
  %v621 = vpop.permute.xlu0 %620
  %623 = vset.pattern.permute.xlu0 1
  %624 = vperm.xlu0 %623, %v33
  %v625 = vpop.permute.xlu0 %624
  %627 = vset.pattern.permute.xlu0 1
  %628 = vperm.xlu0 %627, %v34
  %v629 = vpop.permute.xlu0 %628
  %631 = vset.pattern.permute.xlu0 1
  %632 = vperm.xlu0 %631, %v35
  %v633 = vpop.permute.xlu0 %632
  %635 = vset.pattern.permute.xlu0 1
  %636 = vperm.xlu0 %635, %v36
  %v637 = vpop.permute.xlu0 %636
  %639 = vset.pattern.permute.xlu0 1
  %640 = vperm.xlu0 %639, %v37
  %v641 = vpop.permute.xlu0 %640
  %643 = vset.pattern.permute.xlu0 1
  %644 = vperm.xlu0 %643, %v38
  %v645 = vpop.permute.xlu0 %644
  %647 = vset.pattern.permute.xlu0 1
  %648 = vperm.xlu0 %647, %v39
  %v649 = vpop.permute.xlu0 %648
  %651 = vset.pattern.permute.xlu0 1
  %652 = vperm.xlu0 %651, %v40
  %v653 = vpop.permute.xlu0 %652
  %655 = vset.pattern.permute.xlu0 1
  %656 = vperm.xlu0 %655, %v41
  %v657 = vpop.permute.xlu0 %656
  %659 = vset.pattern.permute.xlu0 1
  %660 = vperm.xlu0 %659, %v42
  %v661 = vpop.permute.xlu0 %660
  %663 = vset.pattern.permute.xlu0 1
  %664 = vperm.xlu0 %663, %v43
  %v665 = vpop.permute.xlu0 %664
  %667 = vset.pattern.permute.xlu0 1
  %668 = vperm.xlu0 %667, %v44
  %v669 = vpop.permute.xlu0 %668
  %671 = vset.pattern.permute.xlu0 1
  %672 = vperm.xlu0 %671, %v45
  %v673 = vpop.permute.xlu0 %672
  %675 = vset.pattern.permute.xlu0 1
  %676 = vperm.xlu0 %675, %v46
  %v677 = vpop.permute.xlu0 %676
  %679 = vset.pattern.permute.xlu0 1
  %680 = vperm.xlu0 %679, %v47
  %v681 = vpop.permute.xlu0 %680
  %v683 = vmul.f32 %v262, %v557
  %v684 = vmul.f32 %v262, %v561
  %v685 = vmul.f32 %v262, %v565
  %v686 = vmul.f32 %v262, %v569
  %v687 = vmul.f32 %v262, %v573
  %v688 = vmul.f32 %v262, %v577
  %v689 = vmul.f32 %v262, %v581
  %v690 = vmul.f32 %v262, %v585
  %v691 = vmul.f32 %v262, %v589
  %v692 = vmul.f32 %v262, %v593
  %v693 = vmul.f32 %v262, %v597
  %v694 = vmul.f32 %v262, %v601
  %v695 = vmul.f32 %v262, %v605
  %v696 = vmul.f32 %v262, %v609
  %v697 = vmul.f32 %v262, %v613
  %v698 = vmul.f32 %v262, %v617
  %v699 = vmul.f32 %v262, %v621
  %v700 = vmul.f32 %v262, %v625
  %v701 = vmul.f32 %v262, %v629
  %v702 = vmul.f32 %v262, %v633
  %v703 = vmul.f32 %v262, %v637
  %v704 = vmul.f32 %v262, %v641
  %v705 = vmul.f32 %v262, %v645
  %v706 = vmul.f32 %v262, %v649
  %v707 = vmul.f32 %v262, %v653
  %v708 = vmul.f32 %v262, %v657
  %v709 = vmul.f32 %v262, %v661
  %v710 = vmul.f32 %v262, %v665
  %v711 = vmul.f32 %v262, %v669
  %v712 = vmul.f32 %v262, %v673
  %v713 = vmul.f32 %v262, %v677
  %v714 = vmul.f32 %v262, %v681
  %v715 = vmul.f32 %v266, %v557
  %v716 = vmul.f32 %v266, %v561
  %v717 = vmul.f32 %v266, %v565
  %v718 = vmul.f32 %v266, %v569
  %v719 = vmul.f32 %v266, %v573
  %v720 = vmul.f32 %v266, %v577
  %v721 = vmul.f32 %v266, %v581
  %v722 = vmul.f32 %v266, %v585
  %v723 = vmul.f32 %v266, %v589
  %v724 = vmul.f32 %v266, %v593
  %v725 = vmul.f32 %v266, %v597
  %v726 = vmul.f32 %v266, %v601
  %v727 = vmul.f32 %v266, %v605
  %v728 = vmul.f32 %v266, %v609
  %v729 = vmul.f32 %v266, %v613
  %v730 = vmul.f32 %v266, %v617
  %v731 = vmul.f32 %v266, %v621
  %v732 = vmul.f32 %v266, %v625
  %v733 = vmul.f32 %v266, %v629
  %v734 = vmul.f32 %v266, %v633
  %v735 = vmul.f32 %v266, %v637
  %v736 = vmul.f32 %v266, %v641
  %v737 = vmul.f32 %v266, %v645
  %v738 = vmul.f32 %v266, %v649
  %v739 = vmul.f32 %v266, %v653
  %v740 = vmul.f32 %v266, %v657
  %v741 = vmul.f32 %v266, %v661
  %v742 = vmul.f32 %v266, %v665
  %v743 = vmul.f32 %v266, %v669
  %v744 = vmul.f32 %v266, %v673
  %v745 = vmul.f32 %v266, %v677
  %v746 = vmul.f32 %v266, %v681
  %811 = vrot.lane.b32.xlu0 %v683, 127
  %v812 = vpop.permute.xlu0 %811
  %813 = vrot.lane.b32.xlu0 %v684, 127
  %v814 = vpop.permute.xlu0 %813
  %815 = vrot.lane.b32.xlu0 %v685, 127
  %v816 = vpop.permute.xlu0 %815
  %817 = vrot.lane.b32.xlu0 %v686, 127
  %v818 = vpop.permute.xlu0 %817
  %819 = vrot.lane.b32.xlu0 %v687, 127
  %v820 = vpop.permute.xlu0 %819
  %821 = vrot.lane.b32.xlu0 %v688, 127
  %v822 = vpop.permute.xlu0 %821
  %823 = vrot.lane.b32.xlu0 %v689, 127
  %v824 = vpop.permute.xlu0 %823
  %825 = vrot.lane.b32.xlu0 %v690, 127
  %v826 = vpop.permute.xlu0 %825
  %827 = vrot.lane.b32.xlu0 %v691, 127
  %v828 = vpop.permute.xlu0 %827
  %829 = vrot.lane.b32.xlu0 %v692, 127
  %v830 = vpop.permute.xlu0 %829
  %831 = vrot.lane.b32.xlu0 %v693, 127
  %v832 = vpop.permute.xlu0 %831
  %833 = vrot.lane.b32.xlu0 %v694, 127
  %v834 = vpop.permute.xlu0 %833
  %835 = vrot.lane.b32.xlu0 %v695, 127
  %v836 = vpop.permute.xlu0 %835
  %837 = vrot.lane.b32.xlu0 %v696, 127
  %v838 = vpop.permute.xlu0 %837
  %839 = vrot.lane.b32.xlu0 %v697, 127
  %v840 = vpop.permute.xlu0 %839
  %841 = vrot.lane.b32.xlu0 %v698, 127
  %v842 = vpop.permute.xlu0 %841
  %843 = vrot.lane.b32.xlu0 %v699, 127
  %v844 = vpop.permute.xlu0 %843
  %845 = vrot.lane.b32.xlu0 %v700, 127
  %v846 = vpop.permute.xlu0 %845
  %847 = vrot.lane.b32.xlu0 %v701, 127
  %v848 = vpop.permute.xlu0 %847
  %849 = vrot.lane.b32.xlu0 %v702, 127
  %v850 = vpop.permute.xlu0 %849
  %851 = vrot.lane.b32.xlu0 %v703, 127
  %v852 = vpop.permute.xlu0 %851
  %853 = vrot.lane.b32.xlu0 %v704, 127
  %v854 = vpop.permute.xlu0 %853
  %855 = vrot.lane.b32.xlu0 %v705, 127
  %v856 = vpop.permute.xlu0 %855
  %857 = vrot.lane.b32.xlu0 %v706, 127
  %v858 = vpop.permute.xlu0 %857
  %859 = vrot.lane.b32.xlu0 %v707, 127
  %v860 = vpop.permute.xlu0 %859
  %861 = vrot.lane.b32.xlu0 %v708, 127
  %v862 = vpop.permute.xlu0 %861
  %863 = vrot.lane.b32.xlu0 %v709, 127
  %v864 = vpop.permute.xlu0 %863
  %865 = vrot.lane.b32.xlu0 %v710, 127
  %v866 = vpop.permute.xlu0 %865
  %867 = vrot.lane.b32.xlu0 %v711, 127
  %v868 = vpop.permute.xlu0 %867
  %869 = vrot.lane.b32.xlu0 %v712, 127
  %v870 = vpop.permute.xlu0 %869
  %871 = vrot.lane.b32.xlu0 %v713, 127
  %v872 = vpop.permute.xlu0 %871
  %873 = vrot.lane.b32.xlu0 %v714, 127
  %v874 = vpop.permute.xlu0 %873
  %875 = vrot.lane.b32.xlu0 %v715, 127
  %v876 = vpop.permute.xlu0 %875
  %877 = vrot.lane.b32.xlu0 %v716, 127
  %v878 = vpop.permute.xlu0 %877
  %879 = vrot.lane.b32.xlu0 %v717, 127
  %v880 = vpop.permute.xlu0 %879
  %881 = vrot.lane.b32.xlu0 %v718, 127
  %v882 = vpop.permute.xlu0 %881
  %883 = vrot.lane.b32.xlu0 %v719, 127
  %v884 = vpop.permute.xlu0 %883
  %885 = vrot.lane.b32.xlu0 %v720, 127
  %v886 = vpop.permute.xlu0 %885
  %887 = vrot.lane.b32.xlu0 %v721, 127
  %v888 = vpop.permute.xlu0 %887
  %889 = vrot.lane.b32.xlu0 %v722, 127
  %v890 = vpop.permute.xlu0 %889
  %891 = vrot.lane.b32.xlu0 %v723, 127
  %v892 = vpop.permute.xlu0 %891
  %893 = vrot.lane.b32.xlu0 %v724, 127
  %v894 = vpop.permute.xlu0 %893
  %895 = vrot.lane.b32.xlu0 %v725, 127
  %v896 = vpop.permute.xlu0 %895
  %897 = vrot.lane.b32.xlu0 %v726, 127
  %v898 = vpop.permute.xlu0 %897
  %899 = vrot.lane.b32.xlu0 %v727, 127
  %v900 = vpop.permute.xlu0 %899
  %901 = vrot.lane.b32.xlu0 %v728, 127
  %v902 = vpop.permute.xlu0 %901
  %903 = vrot.lane.b32.xlu0 %v729, 127
  %v904 = vpop.permute.xlu0 %903
  %905 = vrot.lane.b32.xlu0 %v730, 127
  %v906 = vpop.permute.xlu0 %905
  %907 = vrot.lane.b32.xlu0 %v731, 127
  %v908 = vpop.permute.xlu0 %907
  %909 = vrot.lane.b32.xlu0 %v732, 127
  %v910 = vpop.permute.xlu0 %909
  %911 = vrot.lane.b32.xlu0 %v733, 127
  %v912 = vpop.permute.xlu0 %911
  %913 = vrot.lane.b32.xlu0 %v734, 127
  %v914 = vpop.permute.xlu0 %913
  %915 = vrot.lane.b32.xlu0 %v735, 127
  %v916 = vpop.permute.xlu0 %915
  %917 = vrot.lane.b32.xlu0 %v736, 127
  %v918 = vpop.permute.xlu0 %917
  %919 = vrot.lane.b32.xlu0 %v737, 127
  %v920 = vpop.permute.xlu0 %919
  %921 = vrot.lane.b32.xlu0 %v738, 127
  %v922 = vpop.permute.xlu0 %921
  %923 = vrot.lane.b32.xlu0 %v739, 127
  %v924 = vpop.permute.xlu0 %923
  %925 = vrot.lane.b32.xlu0 %v740, 127
  %v926 = vpop.permute.xlu0 %925
  %927 = vrot.lane.b32.xlu0 %v741, 127
  %v928 = vpop.permute.xlu0 %927
  %929 = vrot.lane.b32.xlu0 %v742, 127
  %v930 = vpop.permute.xlu0 %929
  %931 = vrot.lane.b32.xlu0 %v743, 127
  %v932 = vpop.permute.xlu0 %931
  %933 = vrot.lane.b32.xlu0 %v744, 127
  %v934 = vpop.permute.xlu0 %933
  %935 = vrot.lane.b32.xlu0 %v745, 127
  %v936 = vpop.permute.xlu0 %935
  %937 = vrot.lane.b32.xlu0 %v746, 127
  %v938 = vpop.permute.xlu0 %937
  %v1003 = vadd.f32 %v491, %v812
  %v1004 = vadd.f32 %v492, %v814
  %v1005 = vadd.f32 %v493, %v816
  %v1006 = vadd.f32 %v494, %v818
  %v1007 = vadd.f32 %v495, %v820
  %v1008 = vadd.f32 %v496, %v822
  %v1009 = vadd.f32 %v497, %v824
  %v1010 = vadd.f32 %v498, %v826
  %v1011 = vadd.f32 %v499, %v828
  %v1012 = vadd.f32 %v500, %v830
  %v1013 = vadd.f32 %v501, %v832
  %v1014 = vadd.f32 %v502, %v834
  %v1015 = vadd.f32 %v503, %v836
  %v1016 = vadd.f32 %v504, %v838
  %v1017 = vadd.f32 %v505, %v840
  %v1018 = vadd.f32 %v506, %v842
  %v1019 = vadd.f32 %v507, %v844
  %v1020 = vadd.f32 %v508, %v846
  %v1021 = vadd.f32 %v509, %v848
  %v1022 = vadd.f32 %v510, %v850
  %v1023 = vadd.f32 %v511, %v852
  %v1024 = vadd.f32 %v512, %v854
  %v1025 = vadd.f32 %v513, %v856
  %v1026 = vadd.f32 %v514, %v858
  %v1027 = vadd.f32 %v515, %v860
  %v1028 = vadd.f32 %v516, %v862
  %v1029 = vadd.f32 %v517, %v864
  %v1030 = vadd.f32 %v518, %v866
  %v1031 = vadd.f32 %v519, %v868
  %v1032 = vadd.f32 %v520, %v870
  %v1033 = vadd.f32 %v521, %v872
  %v1034 = vadd.f32 %v522, %v874
  %v1035 = vadd.f32 %v523, %v876
  %v1036 = vadd.f32 %v524, %v878
  %v1037 = vadd.f32 %v525, %v880
  %v1038 = vadd.f32 %v526, %v882
  %v1039 = vadd.f32 %v527, %v884
  %v1040 = vadd.f32 %v528, %v886
  %v1041 = vadd.f32 %v529, %v888
  %v1042 = vadd.f32 %v530, %v890
  %v1043 = vadd.f32 %v531, %v892
  %v1044 = vadd.f32 %v532, %v894
  %v1045 = vadd.f32 %v533, %v896
  %v1046 = vadd.f32 %v534, %v898
  %v1047 = vadd.f32 %v535, %v900
  %v1048 = vadd.f32 %v536, %v902
  %v1049 = vadd.f32 %v537, %v904
  %v1050 = vadd.f32 %v538, %v906
  %v1051 = vadd.f32 %v539, %v908
  %v1052 = vadd.f32 %v540, %v910
  %v1053 = vadd.f32 %v541, %v912
  %v1054 = vadd.f32 %v542, %v914
  %v1055 = vadd.f32 %v543, %v916
  %v1056 = vadd.f32 %v544, %v918
  %v1057 = vadd.f32 %v545, %v920
  %v1058 = vadd.f32 %v546, %v922
  %v1059 = vadd.f32 %v547, %v924
  %v1060 = vadd.f32 %v548, %v926
  %v1061 = vadd.f32 %v549, %v928
  %v1062 = vadd.f32 %v550, %v930
  %v1063 = vadd.f32 %v551, %v932
  %v1064 = vadd.f32 %v552, %v934
  %v1065 = vadd.f32 %v553, %v936
  %v1066 = vadd.f32 %v554, %v938
  %1067 = vset.pattern.permute.xlu0 2
  %1068 = vperm.xlu0 %1067, %v16
  %v1069 = vpop.permute.xlu0 %1068
  %1071 = vset.pattern.permute.xlu0 2
  %1072 = vperm.xlu0 %1071, %v17
  %v1073 = vpop.permute.xlu0 %1072
  %1075 = vset.pattern.permute.xlu0 2
  %1076 = vperm.xlu0 %1075, %v18
  %v1077 = vpop.permute.xlu0 %1076
  %1079 = vset.pattern.permute.xlu0 2
  %1080 = vperm.xlu0 %1079, %v19
  %v1081 = vpop.permute.xlu0 %1080
  %1083 = vset.pattern.permute.xlu0 2
  %1084 = vperm.xlu0 %1083, %v20
  %v1085 = vpop.permute.xlu0 %1084
  %1087 = vset.pattern.permute.xlu0 2
  %1088 = vperm.xlu0 %1087, %v21
  %v1089 = vpop.permute.xlu0 %1088
  %1091 = vset.pattern.permute.xlu0 2
  %1092 = vperm.xlu0 %1091, %v22
  %v1093 = vpop.permute.xlu0 %1092
  %1095 = vset.pattern.permute.xlu0 2
  %1096 = vperm.xlu0 %1095, %v23
  %v1097 = vpop.permute.xlu0 %1096
  %1099 = vset.pattern.permute.xlu0 2
  %1100 = vperm.xlu0 %1099, %v24
  %v1101 = vpop.permute.xlu0 %1100
  %1103 = vset.pattern.permute.xlu0 2
  %1104 = vperm.xlu0 %1103, %v25
  %v1105 = vpop.permute.xlu0 %1104
  %1107 = vset.pattern.permute.xlu0 2
  %1108 = vperm.xlu0 %1107, %v26
  %v1109 = vpop.permute.xlu0 %1108
  %1111 = vset.pattern.permute.xlu0 2
  %1112 = vperm.xlu0 %1111, %v27
  %v1113 = vpop.permute.xlu0 %1112
  %1115 = vset.pattern.permute.xlu0 2
  %1116 = vperm.xlu0 %1115, %v28
  %v1117 = vpop.permute.xlu0 %1116
  %1119 = vset.pattern.permute.xlu0 2
  %1120 = vperm.xlu0 %1119, %v29
  %v1121 = vpop.permute.xlu0 %1120
  %1123 = vset.pattern.permute.xlu0 2
  %1124 = vperm.xlu0 %1123, %v30
  %v1125 = vpop.permute.xlu0 %1124
  %1127 = vset.pattern.permute.xlu0 2
  %1128 = vperm.xlu0 %1127, %v31
  %v1129 = vpop.permute.xlu0 %1128
  %1131 = vset.pattern.permute.xlu0 2
  %1132 = vperm.xlu0 %1131, %v32
  %v1133 = vpop.permute.xlu0 %1132
  %1135 = vset.pattern.permute.xlu0 2
  %1136 = vperm.xlu0 %1135, %v33
  %v1137 = vpop.permute.xlu0 %1136
  %1139 = vset.pattern.permute.xlu0 2
  %1140 = vperm.xlu0 %1139, %v34
  %v1141 = vpop.permute.xlu0 %1140
  %1143 = vset.pattern.permute.xlu0 2
  %1144 = vperm.xlu0 %1143, %v35
  %v1145 = vpop.permute.xlu0 %1144
  %1147 = vset.pattern.permute.xlu0 2
  %1148 = vperm.xlu0 %1147, %v36
  %v1149 = vpop.permute.xlu0 %1148
  %1151 = vset.pattern.permute.xlu0 2
  %1152 = vperm.xlu0 %1151, %v37
  %v1153 = vpop.permute.xlu0 %1152
  %1155 = vset.pattern.permute.xlu0 2
  %1156 = vperm.xlu0 %1155, %v38
  %v1157 = vpop.permute.xlu0 %1156
  %1159 = vset.pattern.permute.xlu0 2
  %1160 = vperm.xlu0 %1159, %v39
  %v1161 = vpop.permute.xlu0 %1160
  %1163 = vset.pattern.permute.xlu0 2
  %1164 = vperm.xlu0 %1163, %v40
  %v1165 = vpop.permute.xlu0 %1164
  %1167 = vset.pattern.permute.xlu0 2
  %1168 = vperm.xlu0 %1167, %v41
  %v1169 = vpop.permute.xlu0 %1168
  %1171 = vset.pattern.permute.xlu0 2
  %1172 = vperm.xlu0 %1171, %v42
  %v1173 = vpop.permute.xlu0 %1172
  %1175 = vset.pattern.permute.xlu0 2
  %1176 = vperm.xlu0 %1175, %v43
  %v1177 = vpop.permute.xlu0 %1176
  %1179 = vset.pattern.permute.xlu0 2
  %1180 = vperm.xlu0 %1179, %v44
  %v1181 = vpop.permute.xlu0 %1180
  %1183 = vset.pattern.permute.xlu0 2
  %1184 = vperm.xlu0 %1183, %v45
  %v1185 = vpop.permute.xlu0 %1184
  %1187 = vset.pattern.permute.xlu0 2
  %1188 = vperm.xlu0 %1187, %v46
  %v1189 = vpop.permute.xlu0 %1188
  %1191 = vset.pattern.permute.xlu0 2
  %1192 = vperm.xlu0 %1191, %v47
  %v1193 = vpop.permute.xlu0 %1192
  %v1195 = vmul.f32 %v262, %v1069
  %v1196 = vmul.f32 %v262, %v1073
  %v1197 = vmul.f32 %v262, %v1077
  %v1198 = vmul.f32 %v262, %v1081
  %v1199 = vmul.f32 %v262, %v1085
  %v1200 = vmul.f32 %v262, %v1089
  %v1201 = vmul.f32 %v262, %v1093
  %v1202 = vmul.f32 %v262, %v1097
  %v1203 = vmul.f32 %v262, %v1101
  %v1204 = vmul.f32 %v262, %v1105
  %v1205 = vmul.f32 %v262, %v1109
  %v1206 = vmul.f32 %v262, %v1113
  %v1207 = vmul.f32 %v262, %v1117
  %v1208 = vmul.f32 %v262, %v1121
  %v1209 = vmul.f32 %v262, %v1125
  %v1210 = vmul.f32 %v262, %v1129
  %v1211 = vmul.f32 %v262, %v1133
  %v1212 = vmul.f32 %v262, %v1137
  %v1213 = vmul.f32 %v262, %v1141
  %v1214 = vmul.f32 %v262, %v1145
  %v1215 = vmul.f32 %v262, %v1149
  %v1216 = vmul.f32 %v262, %v1153
  %v1217 = vmul.f32 %v262, %v1157
  %v1218 = vmul.f32 %v262, %v1161
  %v1219 = vmul.f32 %v262, %v1165
  %v1220 = vmul.f32 %v262, %v1169
  %v1221 = vmul.f32 %v262, %v1173
  %v1222 = vmul.f32 %v262, %v1177
  %v1223 = vmul.f32 %v262, %v1181
  %v1224 = vmul.f32 %v262, %v1185
  %v1225 = vmul.f32 %v262, %v1189
  %v1226 = vmul.f32 %v262, %v1193
  %v1227 = vmul.f32 %v266, %v1069
  %v1228 = vmul.f32 %v266, %v1073
  %v1229 = vmul.f32 %v266, %v1077
  %v1230 = vmul.f32 %v266, %v1081
  %v1231 = vmul.f32 %v266, %v1085
  %v1232 = vmul.f32 %v266, %v1089
  %v1233 = vmul.f32 %v266, %v1093
  %v1234 = vmul.f32 %v266, %v1097
  %v1235 = vmul.f32 %v266, %v1101
  %v1236 = vmul.f32 %v266, %v1105
  %v1237 = vmul.f32 %v266, %v1109
  %v1238 = vmul.f32 %v266, %v1113
  %v1239 = vmul.f32 %v266, %v1117
  %v1240 = vmul.f32 %v266, %v1121
  %v1241 = vmul.f32 %v266, %v1125
  %v1242 = vmul.f32 %v266, %v1129
  %v1243 = vmul.f32 %v266, %v1133
  %v1244 = vmul.f32 %v266, %v1137
  %v1245 = vmul.f32 %v266, %v1141
  %v1246 = vmul.f32 %v266, %v1145
  %v1247 = vmul.f32 %v266, %v1149
  %v1248 = vmul.f32 %v266, %v1153
  %v1249 = vmul.f32 %v266, %v1157
  %v1250 = vmul.f32 %v266, %v1161
  %v1251 = vmul.f32 %v266, %v1165
  %v1252 = vmul.f32 %v266, %v1169
  %v1253 = vmul.f32 %v266, %v1173
  %v1254 = vmul.f32 %v266, %v1177
  %v1255 = vmul.f32 %v266, %v1181
  %v1256 = vmul.f32 %v266, %v1185
  %v1257 = vmul.f32 %v266, %v1189
  %v1258 = vmul.f32 %v266, %v1193
  %1323 = vrot.lane.b32.xlu0 %v1195, 126
  %v1324 = vpop.permute.xlu0 %1323
  %1325 = vrot.lane.b32.xlu0 %v1196, 126
  %v1326 = vpop.permute.xlu0 %1325
  %1327 = vrot.lane.b32.xlu0 %v1197, 126
  %v1328 = vpop.permute.xlu0 %1327
  %1329 = vrot.lane.b32.xlu0 %v1198, 126
  %v1330 = vpop.permute.xlu0 %1329
  %1331 = vrot.lane.b32.xlu0 %v1199, 126
  %v1332 = vpop.permute.xlu0 %1331
  %1333 = vrot.lane.b32.xlu0 %v1200, 126
  %v1334 = vpop.permute.xlu0 %1333
  %1335 = vrot.lane.b32.xlu0 %v1201, 126
  %v1336 = vpop.permute.xlu0 %1335
  %1337 = vrot.lane.b32.xlu0 %v1202, 126
  %v1338 = vpop.permute.xlu0 %1337
  %1339 = vrot.lane.b32.xlu0 %v1203, 126
  %v1340 = vpop.permute.xlu0 %1339
  %1341 = vrot.lane.b32.xlu0 %v1204, 126
  %v1342 = vpop.permute.xlu0 %1341
  %1343 = vrot.lane.b32.xlu0 %v1205, 126
  %v1344 = vpop.permute.xlu0 %1343
  %1345 = vrot.lane.b32.xlu0 %v1206, 126
  %v1346 = vpop.permute.xlu0 %1345
  %1347 = vrot.lane.b32.xlu0 %v1207, 126
  %v1348 = vpop.permute.xlu0 %1347
  %1349 = vrot.lane.b32.xlu0 %v1208, 126
  %v1350 = vpop.permute.xlu0 %1349
  %1351 = vrot.lane.b32.xlu0 %v1209, 126
  %v1352 = vpop.permute.xlu0 %1351
  %1353 = vrot.lane.b32.xlu0 %v1210, 126
  %v1354 = vpop.permute.xlu0 %1353
  %1355 = vrot.lane.b32.xlu0 %v1211, 126
  %v1356 = vpop.permute.xlu0 %1355
  %1357 = vrot.lane.b32.xlu0 %v1212, 126
  %v1358 = vpop.permute.xlu0 %1357
  %1359 = vrot.lane.b32.xlu0 %v1213, 126
  %v1360 = vpop.permute.xlu0 %1359
  %1361 = vrot.lane.b32.xlu0 %v1214, 126
  %v1362 = vpop.permute.xlu0 %1361
  %1363 = vrot.lane.b32.xlu0 %v1215, 126
  %v1364 = vpop.permute.xlu0 %1363
  %1365 = vrot.lane.b32.xlu0 %v1216, 126
  %v1366 = vpop.permute.xlu0 %1365
  %1367 = vrot.lane.b32.xlu0 %v1217, 126
  %v1368 = vpop.permute.xlu0 %1367
  %1369 = vrot.lane.b32.xlu0 %v1218, 126
  %v1370 = vpop.permute.xlu0 %1369
  %1371 = vrot.lane.b32.xlu0 %v1219, 126
  %v1372 = vpop.permute.xlu0 %1371
  %1373 = vrot.lane.b32.xlu0 %v1220, 126
  %v1374 = vpop.permute.xlu0 %1373
  %1375 = vrot.lane.b32.xlu0 %v1221, 126
  %v1376 = vpop.permute.xlu0 %1375
  %1377 = vrot.lane.b32.xlu0 %v1222, 126
  %v1378 = vpop.permute.xlu0 %1377
  %1379 = vrot.lane.b32.xlu0 %v1223, 126
  %v1380 = vpop.permute.xlu0 %1379
  %1381 = vrot.lane.b32.xlu0 %v1224, 126
  %v1382 = vpop.permute.xlu0 %1381
  %1383 = vrot.lane.b32.xlu0 %v1225, 126
  %v1384 = vpop.permute.xlu0 %1383
  %1385 = vrot.lane.b32.xlu0 %v1226, 126
  %v1386 = vpop.permute.xlu0 %1385
  %1387 = vrot.lane.b32.xlu0 %v1227, 126
  %v1388 = vpop.permute.xlu0 %1387
  %1389 = vrot.lane.b32.xlu0 %v1228, 126
  %v1390 = vpop.permute.xlu0 %1389
  %1391 = vrot.lane.b32.xlu0 %v1229, 126
  %v1392 = vpop.permute.xlu0 %1391
  %1393 = vrot.lane.b32.xlu0 %v1230, 126
  %v1394 = vpop.permute.xlu0 %1393
  %1395 = vrot.lane.b32.xlu0 %v1231, 126
  %v1396 = vpop.permute.xlu0 %1395
  %1397 = vrot.lane.b32.xlu0 %v1232, 126
  %v1398 = vpop.permute.xlu0 %1397
  %1399 = vrot.lane.b32.xlu0 %v1233, 126
  %v1400 = vpop.permute.xlu0 %1399
  %1401 = vrot.lane.b32.xlu0 %v1234, 126
  %v1402 = vpop.permute.xlu0 %1401
  %1403 = vrot.lane.b32.xlu0 %v1235, 126
  %v1404 = vpop.permute.xlu0 %1403
  %1405 = vrot.lane.b32.xlu0 %v1236, 126
  %v1406 = vpop.permute.xlu0 %1405
  %1407 = vrot.lane.b32.xlu0 %v1237, 126
  %v1408 = vpop.permute.xlu0 %1407
  %1409 = vrot.lane.b32.xlu0 %v1238, 126
  %v1410 = vpop.permute.xlu0 %1409
  %1411 = vrot.lane.b32.xlu0 %v1239, 126
  %v1412 = vpop.permute.xlu0 %1411
  %1413 = vrot.lane.b32.xlu0 %v1240, 126
  %v1414 = vpop.permute.xlu0 %1413
  %1415 = vrot.lane.b32.xlu0 %v1241, 126
  %v1416 = vpop.permute.xlu0 %1415
  %1417 = vrot.lane.b32.xlu0 %v1242, 126
  %v1418 = vpop.permute.xlu0 %1417
  %1419 = vrot.lane.b32.xlu0 %v1243, 126
  %v1420 = vpop.permute.xlu0 %1419
  %1421 = vrot.lane.b32.xlu0 %v1244, 126
  %v1422 = vpop.permute.xlu0 %1421
  %1423 = vrot.lane.b32.xlu0 %v1245, 126
  %v1424 = vpop.permute.xlu0 %1423
  %1425 = vrot.lane.b32.xlu0 %v1246, 126
  %v1426 = vpop.permute.xlu0 %1425
  %1427 = vrot.lane.b32.xlu0 %v1247, 126
  %v1428 = vpop.permute.xlu0 %1427
  %1429 = vrot.lane.b32.xlu0 %v1248, 126
  %v1430 = vpop.permute.xlu0 %1429
  %1431 = vrot.lane.b32.xlu0 %v1249, 126
  %v1432 = vpop.permute.xlu0 %1431
  %1433 = vrot.lane.b32.xlu0 %v1250, 126
  %v1434 = vpop.permute.xlu0 %1433
  %1435 = vrot.lane.b32.xlu0 %v1251, 126
  %v1436 = vpop.permute.xlu0 %1435
  %1437 = vrot.lane.b32.xlu0 %v1252, 126
  %v1438 = vpop.permute.xlu0 %1437
  %1439 = vrot.lane.b32.xlu0 %v1253, 126
  %v1440 = vpop.permute.xlu0 %1439
  %1441 = vrot.lane.b32.xlu0 %v1254, 126
  %v1442 = vpop.permute.xlu0 %1441
  %1443 = vrot.lane.b32.xlu0 %v1255, 126
  %v1444 = vpop.permute.xlu0 %1443
  %1445 = vrot.lane.b32.xlu0 %v1256, 126
  %v1446 = vpop.permute.xlu0 %1445
  %1447 = vrot.lane.b32.xlu0 %v1257, 126
  %v1448 = vpop.permute.xlu0 %1447
  %1449 = vrot.lane.b32.xlu0 %v1258, 126
  %v1450 = vpop.permute.xlu0 %1449
  %v1515 = vadd.f32 %v1003, %v1324
  %v1516 = vadd.f32 %v1004, %v1326
  %v1517 = vadd.f32 %v1005, %v1328
  %v1518 = vadd.f32 %v1006, %v1330
  %v1519 = vadd.f32 %v1007, %v1332
  %v1520 = vadd.f32 %v1008, %v1334
  %v1521 = vadd.f32 %v1009, %v1336
  %v1522 = vadd.f32 %v1010, %v1338
  %v1523 = vadd.f32 %v1011, %v1340
  %v1524 = vadd.f32 %v1012, %v1342
  %v1525 = vadd.f32 %v1013, %v1344
  %v1526 = vadd.f32 %v1014, %v1346
  %v1527 = vadd.f32 %v1015, %v1348
  %v1528 = vadd.f32 %v1016, %v1350
  %v1529 = vadd.f32 %v1017, %v1352
  %v1530 = vadd.f32 %v1018, %v1354
  %v1531 = vadd.f32 %v1019, %v1356
  %v1532 = vadd.f32 %v1020, %v1358
  %v1533 = vadd.f32 %v1021, %v1360
  %v1534 = vadd.f32 %v1022, %v1362
  %v1535 = vadd.f32 %v1023, %v1364
  %v1536 = vadd.f32 %v1024, %v1366
  %v1537 = vadd.f32 %v1025, %v1368
  %v1538 = vadd.f32 %v1026, %v1370
  %v1539 = vadd.f32 %v1027, %v1372
  %v1540 = vadd.f32 %v1028, %v1374
  %v1541 = vadd.f32 %v1029, %v1376
  %v1542 = vadd.f32 %v1030, %v1378
  %v1543 = vadd.f32 %v1031, %v1380
  %v1544 = vadd.f32 %v1032, %v1382
  %v1545 = vadd.f32 %v1033, %v1384
  %v1546 = vadd.f32 %v1034, %v1386
  %v1547 = vadd.f32 %v1035, %v1388
  %v1548 = vadd.f32 %v1036, %v1390
  %v1549 = vadd.f32 %v1037, %v1392
  %v1550 = vadd.f32 %v1038, %v1394
  %v1551 = vadd.f32 %v1039, %v1396
  %v1552 = vadd.f32 %v1040, %v1398
  %v1553 = vadd.f32 %v1041, %v1400
  %v1554 = vadd.f32 %v1042, %v1402
  %v1555 = vadd.f32 %v1043, %v1404
  %v1556 = vadd.f32 %v1044, %v1406
  %v1557 = vadd.f32 %v1045, %v1408
  %v1558 = vadd.f32 %v1046, %v1410
  %v1559 = vadd.f32 %v1047, %v1412
  %v1560 = vadd.f32 %v1048, %v1414
  %v1561 = vadd.f32 %v1049, %v1416
  %v1562 = vadd.f32 %v1050, %v1418
  %v1563 = vadd.f32 %v1051, %v1420
  %v1564 = vadd.f32 %v1052, %v1422
  %v1565 = vadd.f32 %v1053, %v1424
  %v1566 = vadd.f32 %v1054, %v1426
  %v1567 = vadd.f32 %v1055, %v1428
  %v1568 = vadd.f32 %v1056, %v1430
  %v1569 = vadd.f32 %v1057, %v1432
  %v1570 = vadd.f32 %v1058, %v1434
  %v1571 = vadd.f32 %v1059, %v1436
  %v1572 = vadd.f32 %v1060, %v1438
  %v1573 = vadd.f32 %v1061, %v1440
  %v1574 = vadd.f32 %v1062, %v1442
  %v1575 = vadd.f32 %v1063, %v1444
  %v1576 = vadd.f32 %v1064, %v1446
  %v1577 = vadd.f32 %v1065, %v1448
  %v1578 = vadd.f32 %v1066, %v1450
  %1579 = vset.pattern.permute.xlu0 3
  %1580 = vperm.xlu0 %1579, %v16
  %v1581 = vpop.permute.xlu0 %1580
  %1583 = vset.pattern.permute.xlu0 3
  %1584 = vperm.xlu0 %1583, %v17
  %v1585 = vpop.permute.xlu0 %1584
  %1587 = vset.pattern.permute.xlu0 3
  %1588 = vperm.xlu0 %1587, %v18
  %v1589 = vpop.permute.xlu0 %1588
  %1591 = vset.pattern.permute.xlu0 3
  %1592 = vperm.xlu0 %1591, %v19
  %v1593 = vpop.permute.xlu0 %1592
  %1595 = vset.pattern.permute.xlu0 3
  %1596 = vperm.xlu0 %1595, %v20
  %v1597 = vpop.permute.xlu0 %1596
  %1599 = vset.pattern.permute.xlu0 3
  %1600 = vperm.xlu0 %1599, %v21
  %v1601 = vpop.permute.xlu0 %1600
  %1603 = vset.pattern.permute.xlu0 3
  %1604 = vperm.xlu0 %1603, %v22
  %v1605 = vpop.permute.xlu0 %1604
  %1607 = vset.pattern.permute.xlu0 3
  %1608 = vperm.xlu0 %1607, %v23
  %v1609 = vpop.permute.xlu0 %1608
  %1611 = vset.pattern.permute.xlu0 3
  %1612 = vperm.xlu0 %1611, %v24
  %v1613 = vpop.permute.xlu0 %1612
  %1615 = vset.pattern.permute.xlu0 3
  %1616 = vperm.xlu0 %1615, %v25
  %v1617 = vpop.permute.xlu0 %1616
  %1619 = vset.pattern.permute.xlu0 3
  %1620 = vperm.xlu0 %1619, %v26
  %v1621 = vpop.permute.xlu0 %1620
  %1623 = vset.pattern.permute.xlu0 3
  %1624 = vperm.xlu0 %1623, %v27
  %v1625 = vpop.permute.xlu0 %1624
  %1627 = vset.pattern.permute.xlu0 3
  %1628 = vperm.xlu0 %1627, %v28
  %v1629 = vpop.permute.xlu0 %1628
  %1631 = vset.pattern.permute.xlu0 3
  %1632 = vperm.xlu0 %1631, %v29
  %v1633 = vpop.permute.xlu0 %1632
  %1635 = vset.pattern.permute.xlu0 3
  %1636 = vperm.xlu0 %1635, %v30
  %v1637 = vpop.permute.xlu0 %1636
  %1639 = vset.pattern.permute.xlu0 3
  %1640 = vperm.xlu0 %1639, %v31
  %v1641 = vpop.permute.xlu0 %1640
  %1643 = vset.pattern.permute.xlu0 3
  %1644 = vperm.xlu0 %1643, %v32
  %v1645 = vpop.permute.xlu0 %1644
  %1647 = vset.pattern.permute.xlu0 3
  %1648 = vperm.xlu0 %1647, %v33
  %v1649 = vpop.permute.xlu0 %1648
  %1651 = vset.pattern.permute.xlu0 3
  %1652 = vperm.xlu0 %1651, %v34
  %v1653 = vpop.permute.xlu0 %1652
  %1655 = vset.pattern.permute.xlu0 3
  %1656 = vperm.xlu0 %1655, %v35
  %v1657 = vpop.permute.xlu0 %1656
  %1659 = vset.pattern.permute.xlu0 3
  %1660 = vperm.xlu0 %1659, %v36
  %v1661 = vpop.permute.xlu0 %1660
  %1663 = vset.pattern.permute.xlu0 3
  %1664 = vperm.xlu0 %1663, %v37
  %v1665 = vpop.permute.xlu0 %1664
  %1667 = vset.pattern.permute.xlu0 3
  %1668 = vperm.xlu0 %1667, %v38
  %v1669 = vpop.permute.xlu0 %1668
  %1671 = vset.pattern.permute.xlu0 3
  %1672 = vperm.xlu0 %1671, %v39
  %v1673 = vpop.permute.xlu0 %1672
  %1675 = vset.pattern.permute.xlu0 3
  %1676 = vperm.xlu0 %1675, %v40
  %v1677 = vpop.permute.xlu0 %1676
  %1679 = vset.pattern.permute.xlu0 3
  %1680 = vperm.xlu0 %1679, %v41
  %v1681 = vpop.permute.xlu0 %1680
  %1683 = vset.pattern.permute.xlu0 3
  %1684 = vperm.xlu0 %1683, %v42
  %v1685 = vpop.permute.xlu0 %1684
  %1687 = vset.pattern.permute.xlu0 3
  %1688 = vperm.xlu0 %1687, %v43
  %v1689 = vpop.permute.xlu0 %1688
  %1691 = vset.pattern.permute.xlu0 3
  %1692 = vperm.xlu0 %1691, %v44
  %v1693 = vpop.permute.xlu0 %1692
  %1695 = vset.pattern.permute.xlu0 3
  %1696 = vperm.xlu0 %1695, %v45
  %v1697 = vpop.permute.xlu0 %1696
  %1699 = vset.pattern.permute.xlu0 3
  %1700 = vperm.xlu0 %1699, %v46
  %v1701 = vpop.permute.xlu0 %1700
  %1703 = vset.pattern.permute.xlu0 3
  %1704 = vperm.xlu0 %1703, %v47
  %v1705 = vpop.permute.xlu0 %1704
  %v1707 = vmul.f32 %v262, %v1581
  %v1708 = vmul.f32 %v262, %v1585
  %v1709 = vmul.f32 %v262, %v1589
  %v1710 = vmul.f32 %v262, %v1593
  %v1711 = vmul.f32 %v262, %v1597
  %v1712 = vmul.f32 %v262, %v1601
  %v1713 = vmul.f32 %v262, %v1605
  %v1714 = vmul.f32 %v262, %v1609
  %v1715 = vmul.f32 %v262, %v1613
  %v1716 = vmul.f32 %v262, %v1617
  %v1717 = vmul.f32 %v262, %v1621
  %v1718 = vmul.f32 %v262, %v1625
  %v1719 = vmul.f32 %v262, %v1629
  %v1720 = vmul.f32 %v262, %v1633
  %v1721 = vmul.f32 %v262, %v1637
  %v1722 = vmul.f32 %v262, %v1641
  %v1723 = vmul.f32 %v262, %v1645
  %v1724 = vmul.f32 %v262, %v1649
  %v1725 = vmul.f32 %v262, %v1653
  %v1726 = vmul.f32 %v262, %v1657
  %v1727 = vmul.f32 %v262, %v1661
  %v1728 = vmul.f32 %v262, %v1665
  %v1729 = vmul.f32 %v262, %v1669
  %v1730 = vmul.f32 %v262, %v1673
  %v1731 = vmul.f32 %v262, %v1677
  %v1732 = vmul.f32 %v262, %v1681
  %v1733 = vmul.f32 %v262, %v1685
  %v1734 = vmul.f32 %v262, %v1689
  %v1735 = vmul.f32 %v262, %v1693
  %v1736 = vmul.f32 %v262, %v1697
  %v1737 = vmul.f32 %v262, %v1701
  %v1738 = vmul.f32 %v262, %v1705
  %v1739 = vmul.f32 %v266, %v1581
  %v1740 = vmul.f32 %v266, %v1585
  %v1741 = vmul.f32 %v266, %v1589
  %v1742 = vmul.f32 %v266, %v1593
  %v1743 = vmul.f32 %v266, %v1597
  %v1744 = vmul.f32 %v266, %v1601
  %v1745 = vmul.f32 %v266, %v1605
  %v1746 = vmul.f32 %v266, %v1609
  %v1747 = vmul.f32 %v266, %v1613
  %v1748 = vmul.f32 %v266, %v1617
  %v1749 = vmul.f32 %v266, %v1621
  %v1750 = vmul.f32 %v266, %v1625
  %v1751 = vmul.f32 %v266, %v1629
  %v1752 = vmul.f32 %v266, %v1633
  %v1753 = vmul.f32 %v266, %v1637
  %v1754 = vmul.f32 %v266, %v1641
  %v1755 = vmul.f32 %v266, %v1645
  %v1756 = vmul.f32 %v266, %v1649
  %v1757 = vmul.f32 %v266, %v1653
  %v1758 = vmul.f32 %v266, %v1657
  %v1759 = vmul.f32 %v266, %v1661
  %v1760 = vmul.f32 %v266, %v1665
  %v1761 = vmul.f32 %v266, %v1669
  %v1762 = vmul.f32 %v266, %v1673
  %v1763 = vmul.f32 %v266, %v1677
  %v1764 = vmul.f32 %v266, %v1681
  %v1765 = vmul.f32 %v266, %v1685
  %v1766 = vmul.f32 %v266, %v1689
  %v1767 = vmul.f32 %v266, %v1693
  %v1768 = vmul.f32 %v266, %v1697
  %v1769 = vmul.f32 %v266, %v1701
  %v1770 = vmul.f32 %v266, %v1705
  %1835 = vrot.lane.b32.xlu0 %v1707, 125
  %v1836 = vpop.permute.xlu0 %1835
  %1837 = vrot.lane.b32.xlu0 %v1708, 125
  %v1838 = vpop.permute.xlu0 %1837
  %1839 = vrot.lane.b32.xlu0 %v1709, 125
  %v1840 = vpop.permute.xlu0 %1839
  %1841 = vrot.lane.b32.xlu0 %v1710, 125
  %v1842 = vpop.permute.xlu0 %1841
  %1843 = vrot.lane.b32.xlu0 %v1711, 125
  %v1844 = vpop.permute.xlu0 %1843
  %1845 = vrot.lane.b32.xlu0 %v1712, 125
  %v1846 = vpop.permute.xlu0 %1845
  %1847 = vrot.lane.b32.xlu0 %v1713, 125
  %v1848 = vpop.permute.xlu0 %1847
  %1849 = vrot.lane.b32.xlu0 %v1714, 125
  %v1850 = vpop.permute.xlu0 %1849
  %1851 = vrot.lane.b32.xlu0 %v1715, 125
  %v1852 = vpop.permute.xlu0 %1851
  %1853 = vrot.lane.b32.xlu0 %v1716, 125
  %v1854 = vpop.permute.xlu0 %1853
  %1855 = vrot.lane.b32.xlu0 %v1717, 125
  %v1856 = vpop.permute.xlu0 %1855
  %1857 = vrot.lane.b32.xlu0 %v1718, 125
  %v1858 = vpop.permute.xlu0 %1857
  %1859 = vrot.lane.b32.xlu0 %v1719, 125
  %v1860 = vpop.permute.xlu0 %1859
  %1861 = vrot.lane.b32.xlu0 %v1720, 125
  %v1862 = vpop.permute.xlu0 %1861
  %1863 = vrot.lane.b32.xlu0 %v1721, 125
  %v1864 = vpop.permute.xlu0 %1863
  %1865 = vrot.lane.b32.xlu0 %v1722, 125
  %v1866 = vpop.permute.xlu0 %1865
  %1867 = vrot.lane.b32.xlu0 %v1723, 125
  %v1868 = vpop.permute.xlu0 %1867
  %1869 = vrot.lane.b32.xlu0 %v1724, 125
  %v1870 = vpop.permute.xlu0 %1869
  %1871 = vrot.lane.b32.xlu0 %v1725, 125
  %v1872 = vpop.permute.xlu0 %1871
  %1873 = vrot.lane.b32.xlu0 %v1726, 125
  %v1874 = vpop.permute.xlu0 %1873
  %1875 = vrot.lane.b32.xlu0 %v1727, 125
  %v1876 = vpop.permute.xlu0 %1875
  %1877 = vrot.lane.b32.xlu0 %v1728, 125
  %v1878 = vpop.permute.xlu0 %1877
  %1879 = vrot.lane.b32.xlu0 %v1729, 125
  %v1880 = vpop.permute.xlu0 %1879
  %1881 = vrot.lane.b32.xlu0 %v1730, 125
  %v1882 = vpop.permute.xlu0 %1881
  %1883 = vrot.lane.b32.xlu0 %v1731, 125
  %v1884 = vpop.permute.xlu0 %1883
  %1885 = vrot.lane.b32.xlu0 %v1732, 125
  %v1886 = vpop.permute.xlu0 %1885
  %1887 = vrot.lane.b32.xlu0 %v1733, 125
  %v1888 = vpop.permute.xlu0 %1887
  %1889 = vrot.lane.b32.xlu0 %v1734, 125
  %v1890 = vpop.permute.xlu0 %1889
  %1891 = vrot.lane.b32.xlu0 %v1735, 125
  %v1892 = vpop.permute.xlu0 %1891
  %1893 = vrot.lane.b32.xlu0 %v1736, 125
  %v1894 = vpop.permute.xlu0 %1893
  %1895 = vrot.lane.b32.xlu0 %v1737, 125
  %v1896 = vpop.permute.xlu0 %1895
  %1897 = vrot.lane.b32.xlu0 %v1738, 125
  %v1898 = vpop.permute.xlu0 %1897
  %1899 = vrot.lane.b32.xlu0 %v1739, 125
  %v1900 = vpop.permute.xlu0 %1899
  %1901 = vrot.lane.b32.xlu0 %v1740, 125
  %v1902 = vpop.permute.xlu0 %1901
  %1903 = vrot.lane.b32.xlu0 %v1741, 125
  %v1904 = vpop.permute.xlu0 %1903
  %1905 = vrot.lane.b32.xlu0 %v1742, 125
  %v1906 = vpop.permute.xlu0 %1905
  %1907 = vrot.lane.b32.xlu0 %v1743, 125
  %v1908 = vpop.permute.xlu0 %1907
  %1909 = vrot.lane.b32.xlu0 %v1744, 125
  %v1910 = vpop.permute.xlu0 %1909
  %1911 = vrot.lane.b32.xlu0 %v1745, 125
  %v1912 = vpop.permute.xlu0 %1911
  %1913 = vrot.lane.b32.xlu0 %v1746, 125
  %v1914 = vpop.permute.xlu0 %1913
  %1915 = vrot.lane.b32.xlu0 %v1747, 125
  %v1916 = vpop.permute.xlu0 %1915
  %1917 = vrot.lane.b32.xlu0 %v1748, 125
  %v1918 = vpop.permute.xlu0 %1917
  %1919 = vrot.lane.b32.xlu0 %v1749, 125
  %v1920 = vpop.permute.xlu0 %1919
  %1921 = vrot.lane.b32.xlu0 %v1750, 125
  %v1922 = vpop.permute.xlu0 %1921
  %1923 = vrot.lane.b32.xlu0 %v1751, 125
  %v1924 = vpop.permute.xlu0 %1923
  %1925 = vrot.lane.b32.xlu0 %v1752, 125
  %v1926 = vpop.permute.xlu0 %1925
  %1927 = vrot.lane.b32.xlu0 %v1753, 125
  %v1928 = vpop.permute.xlu0 %1927
  %1929 = vrot.lane.b32.xlu0 %v1754, 125
  %v1930 = vpop.permute.xlu0 %1929
  %1931 = vrot.lane.b32.xlu0 %v1755, 125
  %v1932 = vpop.permute.xlu0 %1931
  %1933 = vrot.lane.b32.xlu0 %v1756, 125
  %v1934 = vpop.permute.xlu0 %1933
  %1935 = vrot.lane.b32.xlu0 %v1757, 125
  %v1936 = vpop.permute.xlu0 %1935
  %1937 = vrot.lane.b32.xlu0 %v1758, 125
  %v1938 = vpop.permute.xlu0 %1937
  %1939 = vrot.lane.b32.xlu0 %v1759, 125
  %v1940 = vpop.permute.xlu0 %1939
  %1941 = vrot.lane.b32.xlu0 %v1760, 125
  %v1942 = vpop.permute.xlu0 %1941
  %1943 = vrot.lane.b32.xlu0 %v1761, 125
  %v1944 = vpop.permute.xlu0 %1943
  %1945 = vrot.lane.b32.xlu0 %v1762, 125
  %v1946 = vpop.permute.xlu0 %1945
  %1947 = vrot.lane.b32.xlu0 %v1763, 125
  %v1948 = vpop.permute.xlu0 %1947
  %1949 = vrot.lane.b32.xlu0 %v1764, 125
  %v1950 = vpop.permute.xlu0 %1949
  %1951 = vrot.lane.b32.xlu0 %v1765, 125
  %v1952 = vpop.permute.xlu0 %1951
  %1953 = vrot.lane.b32.xlu0 %v1766, 125
  %v1954 = vpop.permute.xlu0 %1953
  %1955 = vrot.lane.b32.xlu0 %v1767, 125
  %v1956 = vpop.permute.xlu0 %1955
  %1957 = vrot.lane.b32.xlu0 %v1768, 125
  %v1958 = vpop.permute.xlu0 %1957
  %1959 = vrot.lane.b32.xlu0 %v1769, 125
  %v1960 = vpop.permute.xlu0 %1959
  %1961 = vrot.lane.b32.xlu0 %v1770, 125
  %v1962 = vpop.permute.xlu0 %1961
  %v2027 = vadd.f32 %v1515, %v1836
  %v2028 = vadd.f32 %v1516, %v1838
  %v2029 = vadd.f32 %v1517, %v1840
  %v2030 = vadd.f32 %v1518, %v1842
  %v2031 = vadd.f32 %v1519, %v1844
  %v2032 = vadd.f32 %v1520, %v1846
  %v2033 = vadd.f32 %v1521, %v1848
  %v2034 = vadd.f32 %v1522, %v1850
  %v2035 = vadd.f32 %v1523, %v1852
  %v2036 = vadd.f32 %v1524, %v1854
  %v2037 = vadd.f32 %v1525, %v1856
  %v2038 = vadd.f32 %v1526, %v1858
  %v2039 = vadd.f32 %v1527, %v1860
  %v2040 = vadd.f32 %v1528, %v1862
  %v2041 = vadd.f32 %v1529, %v1864
  %v2042 = vadd.f32 %v1530, %v1866
  %v2043 = vadd.f32 %v1531, %v1868
  %v2044 = vadd.f32 %v1532, %v1870
  %v2045 = vadd.f32 %v1533, %v1872
  %v2046 = vadd.f32 %v1534, %v1874
  %v2047 = vadd.f32 %v1535, %v1876
  %v2048 = vadd.f32 %v1536, %v1878
  %v2049 = vadd.f32 %v1537, %v1880
  %v2050 = vadd.f32 %v1538, %v1882
  %v2051 = vadd.f32 %v1539, %v1884
  %v2052 = vadd.f32 %v1540, %v1886
  %v2053 = vadd.f32 %v1541, %v1888
  %v2054 = vadd.f32 %v1542, %v1890
  %v2055 = vadd.f32 %v1543, %v1892
  %v2056 = vadd.f32 %v1544, %v1894
  %v2057 = vadd.f32 %v1545, %v1896
  %v2058 = vadd.f32 %v1546, %v1898
  %v2059 = vadd.f32 %v1547, %v1900
  %v2060 = vadd.f32 %v1548, %v1902
  %v2061 = vadd.f32 %v1549, %v1904
  %v2062 = vadd.f32 %v1550, %v1906
  %v2063 = vadd.f32 %v1551, %v1908
  %v2064 = vadd.f32 %v1552, %v1910
  %v2065 = vadd.f32 %v1553, %v1912
  %v2066 = vadd.f32 %v1554, %v1914
  %v2067 = vadd.f32 %v1555, %v1916
  %v2068 = vadd.f32 %v1556, %v1918
  %v2069 = vadd.f32 %v1557, %v1920
  %v2070 = vadd.f32 %v1558, %v1922
  %v2071 = vadd.f32 %v1559, %v1924
  %v2072 = vadd.f32 %v1560, %v1926
  %v2073 = vadd.f32 %v1561, %v1928
  %v2074 = vadd.f32 %v1562, %v1930
  %v2075 = vadd.f32 %v1563, %v1932
  %v2076 = vadd.f32 %v1564, %v1934
  %v2077 = vadd.f32 %v1565, %v1936
  %v2078 = vadd.f32 %v1566, %v1938
  %v2079 = vadd.f32 %v1567, %v1940
  %v2080 = vadd.f32 %v1568, %v1942
  %v2081 = vadd.f32 %v1569, %v1944
  %v2082 = vadd.f32 %v1570, %v1946
  %v2083 = vadd.f32 %v1571, %v1948
  %v2084 = vadd.f32 %v1572, %v1950
  %v2085 = vadd.f32 %v1573, %v1952
  %v2086 = vadd.f32 %v1574, %v1954
  %v2087 = vadd.f32 %v1575, %v1956
  %v2088 = vadd.f32 %v1576, %v1958
  %v2089 = vadd.f32 %v1577, %v1960
  %v2090 = vadd.f32 %v1578, %v1962
  %2091 = vset.pattern.permute.xlu0 4
  %2092 = vperm.xlu0 %2091, %v16
  %v2093 = vpop.permute.xlu0 %2092
  %2095 = vset.pattern.permute.xlu0 4
  %2096 = vperm.xlu0 %2095, %v17
  %v2097 = vpop.permute.xlu0 %2096
  %2099 = vset.pattern.permute.xlu0 4
  %2100 = vperm.xlu0 %2099, %v18
  %v2101 = vpop.permute.xlu0 %2100
  %2103 = vset.pattern.permute.xlu0 4
  %2104 = vperm.xlu0 %2103, %v19
  %v2105 = vpop.permute.xlu0 %2104
  %2107 = vset.pattern.permute.xlu0 4
  %2108 = vperm.xlu0 %2107, %v20
  %v2109 = vpop.permute.xlu0 %2108
  %2111 = vset.pattern.permute.xlu0 4
  %2112 = vperm.xlu0 %2111, %v21
  %v2113 = vpop.permute.xlu0 %2112
  %2115 = vset.pattern.permute.xlu0 4
  %2116 = vperm.xlu0 %2115, %v22
  %v2117 = vpop.permute.xlu0 %2116
  %2119 = vset.pattern.permute.xlu0 4
  %2120 = vperm.xlu0 %2119, %v23
  %v2121 = vpop.permute.xlu0 %2120
  %2123 = vset.pattern.permute.xlu0 4
  %2124 = vperm.xlu0 %2123, %v24
  %v2125 = vpop.permute.xlu0 %2124
  %2127 = vset.pattern.permute.xlu0 4
  %2128 = vperm.xlu0 %2127, %v25
  %v2129 = vpop.permute.xlu0 %2128
  %2131 = vset.pattern.permute.xlu0 4
  %2132 = vperm.xlu0 %2131, %v26
  %v2133 = vpop.permute.xlu0 %2132
  %2135 = vset.pattern.permute.xlu0 4
  %2136 = vperm.xlu0 %2135, %v27
  %v2137 = vpop.permute.xlu0 %2136
  %2139 = vset.pattern.permute.xlu0 4
  %2140 = vperm.xlu0 %2139, %v28
  %v2141 = vpop.permute.xlu0 %2140
  %2143 = vset.pattern.permute.xlu0 4
  %2144 = vperm.xlu0 %2143, %v29
  %v2145 = vpop.permute.xlu0 %2144
  %2147 = vset.pattern.permute.xlu0 4
  %2148 = vperm.xlu0 %2147, %v30
  %v2149 = vpop.permute.xlu0 %2148
  %2151 = vset.pattern.permute.xlu0 4
  %2152 = vperm.xlu0 %2151, %v31
  %v2153 = vpop.permute.xlu0 %2152
  %2155 = vset.pattern.permute.xlu0 4
  %2156 = vperm.xlu0 %2155, %v32
  %v2157 = vpop.permute.xlu0 %2156
  %2159 = vset.pattern.permute.xlu0 4
  %2160 = vperm.xlu0 %2159, %v33
  %v2161 = vpop.permute.xlu0 %2160
  %2163 = vset.pattern.permute.xlu0 4
  %2164 = vperm.xlu0 %2163, %v34
  %v2165 = vpop.permute.xlu0 %2164
  %2167 = vset.pattern.permute.xlu0 4
  %2168 = vperm.xlu0 %2167, %v35
  %v2169 = vpop.permute.xlu0 %2168
  %2171 = vset.pattern.permute.xlu0 4
  %2172 = vperm.xlu0 %2171, %v36
  %v2173 = vpop.permute.xlu0 %2172
  %2175 = vset.pattern.permute.xlu0 4
  %2176 = vperm.xlu0 %2175, %v37
  %v2177 = vpop.permute.xlu0 %2176
  %2179 = vset.pattern.permute.xlu0 4
  %2180 = vperm.xlu0 %2179, %v38
  %v2181 = vpop.permute.xlu0 %2180
  %2183 = vset.pattern.permute.xlu0 4
  %2184 = vperm.xlu0 %2183, %v39
  %v2185 = vpop.permute.xlu0 %2184
  %2187 = vset.pattern.permute.xlu0 4
  %2188 = vperm.xlu0 %2187, %v40
  %v2189 = vpop.permute.xlu0 %2188
  %2191 = vset.pattern.permute.xlu0 4
  %2192 = vperm.xlu0 %2191, %v41
  %v2193 = vpop.permute.xlu0 %2192
  %2195 = vset.pattern.permute.xlu0 4
  %2196 = vperm.xlu0 %2195, %v42
  %v2197 = vpop.permute.xlu0 %2196
  %2199 = vset.pattern.permute.xlu0 4
  %2200 = vperm.xlu0 %2199, %v43
  %v2201 = vpop.permute.xlu0 %2200
  %2203 = vset.pattern.permute.xlu0 4
  %2204 = vperm.xlu0 %2203, %v44
  %v2205 = vpop.permute.xlu0 %2204
  %2207 = vset.pattern.permute.xlu0 4
  %2208 = vperm.xlu0 %2207, %v45
  %v2209 = vpop.permute.xlu0 %2208
  %2211 = vset.pattern.permute.xlu0 4
  %2212 = vperm.xlu0 %2211, %v46
  %v2213 = vpop.permute.xlu0 %2212
  %2215 = vset.pattern.permute.xlu0 4
  %2216 = vperm.xlu0 %2215, %v47
  %v2217 = vpop.permute.xlu0 %2216
  %v2219 = vmul.f32 %v262, %v2093
  %v2220 = vmul.f32 %v262, %v2097
  %v2221 = vmul.f32 %v262, %v2101
  %v2222 = vmul.f32 %v262, %v2105
  %v2223 = vmul.f32 %v262, %v2109
  %v2224 = vmul.f32 %v262, %v2113
  %v2225 = vmul.f32 %v262, %v2117
  %v2226 = vmul.f32 %v262, %v2121
  %v2227 = vmul.f32 %v262, %v2125
  %v2228 = vmul.f32 %v262, %v2129
  %v2229 = vmul.f32 %v262, %v2133
  %v2230 = vmul.f32 %v262, %v2137
  %v2231 = vmul.f32 %v262, %v2141
  %v2232 = vmul.f32 %v262, %v2145
  %v2233 = vmul.f32 %v262, %v2149
  %v2234 = vmul.f32 %v262, %v2153
  %v2235 = vmul.f32 %v262, %v2157
  %v2236 = vmul.f32 %v262, %v2161
  %v2237 = vmul.f32 %v262, %v2165
  %v2238 = vmul.f32 %v262, %v2169
  %v2239 = vmul.f32 %v262, %v2173
  %v2240 = vmul.f32 %v262, %v2177
  %v2241 = vmul.f32 %v262, %v2181
  %v2242 = vmul.f32 %v262, %v2185
  %v2243 = vmul.f32 %v262, %v2189
  %v2244 = vmul.f32 %v262, %v2193
  %v2245 = vmul.f32 %v262, %v2197
  %v2246 = vmul.f32 %v262, %v2201
  %v2247 = vmul.f32 %v262, %v2205
  %v2248 = vmul.f32 %v262, %v2209
  %v2249 = vmul.f32 %v262, %v2213
  %v2250 = vmul.f32 %v262, %v2217
  %v2251 = vmul.f32 %v266, %v2093
  %v2252 = vmul.f32 %v266, %v2097
  %v2253 = vmul.f32 %v266, %v2101
  %v2254 = vmul.f32 %v266, %v2105
  %v2255 = vmul.f32 %v266, %v2109
  %v2256 = vmul.f32 %v266, %v2113
  %v2257 = vmul.f32 %v266, %v2117
  %v2258 = vmul.f32 %v266, %v2121
  %v2259 = vmul.f32 %v266, %v2125
  %v2260 = vmul.f32 %v266, %v2129
  %v2261 = vmul.f32 %v266, %v2133
  %v2262 = vmul.f32 %v266, %v2137
  %v2263 = vmul.f32 %v266, %v2141
  %v2264 = vmul.f32 %v266, %v2145
  %v2265 = vmul.f32 %v266, %v2149
  %v2266 = vmul.f32 %v266, %v2153
  %v2267 = vmul.f32 %v266, %v2157
  %v2268 = vmul.f32 %v266, %v2161
  %v2269 = vmul.f32 %v266, %v2165
  %v2270 = vmul.f32 %v266, %v2169
  %v2271 = vmul.f32 %v266, %v2173
  %v2272 = vmul.f32 %v266, %v2177
  %v2273 = vmul.f32 %v266, %v2181
  %v2274 = vmul.f32 %v266, %v2185
  %v2275 = vmul.f32 %v266, %v2189
  %v2276 = vmul.f32 %v266, %v2193
  %v2277 = vmul.f32 %v266, %v2197
  %v2278 = vmul.f32 %v266, %v2201
  %v2279 = vmul.f32 %v266, %v2205
  %v2280 = vmul.f32 %v266, %v2209
  %v2281 = vmul.f32 %v266, %v2213
  %v2282 = vmul.f32 %v266, %v2217
  %2347 = vrot.lane.b32.xlu0 %v2219, 124
  %v2348 = vpop.permute.xlu0 %2347
  %2349 = vrot.lane.b32.xlu0 %v2220, 124
  %v2350 = vpop.permute.xlu0 %2349
  %2351 = vrot.lane.b32.xlu0 %v2221, 124
  %v2352 = vpop.permute.xlu0 %2351
  %2353 = vrot.lane.b32.xlu0 %v2222, 124
  %v2354 = vpop.permute.xlu0 %2353
  %2355 = vrot.lane.b32.xlu0 %v2223, 124
  %v2356 = vpop.permute.xlu0 %2355
  %2357 = vrot.lane.b32.xlu0 %v2224, 124
  %v2358 = vpop.permute.xlu0 %2357
  %2359 = vrot.lane.b32.xlu0 %v2225, 124
  %v2360 = vpop.permute.xlu0 %2359
  %2361 = vrot.lane.b32.xlu0 %v2226, 124
  %v2362 = vpop.permute.xlu0 %2361
  %2363 = vrot.lane.b32.xlu0 %v2227, 124
  %v2364 = vpop.permute.xlu0 %2363
  %2365 = vrot.lane.b32.xlu0 %v2228, 124
  %v2366 = vpop.permute.xlu0 %2365
  %2367 = vrot.lane.b32.xlu0 %v2229, 124
  %v2368 = vpop.permute.xlu0 %2367
  %2369 = vrot.lane.b32.xlu0 %v2230, 124
  %v2370 = vpop.permute.xlu0 %2369
  %2371 = vrot.lane.b32.xlu0 %v2231, 124
  %v2372 = vpop.permute.xlu0 %2371
  %2373 = vrot.lane.b32.xlu0 %v2232, 124
  %v2374 = vpop.permute.xlu0 %2373
  %2375 = vrot.lane.b32.xlu0 %v2233, 124
  %v2376 = vpop.permute.xlu0 %2375
  %2377 = vrot.lane.b32.xlu0 %v2234, 124
  %v2378 = vpop.permute.xlu0 %2377
  %2379 = vrot.lane.b32.xlu0 %v2235, 124
  %v2380 = vpop.permute.xlu0 %2379
  %2381 = vrot.lane.b32.xlu0 %v2236, 124
  %v2382 = vpop.permute.xlu0 %2381
  %2383 = vrot.lane.b32.xlu0 %v2237, 124
  %v2384 = vpop.permute.xlu0 %2383
  %2385 = vrot.lane.b32.xlu0 %v2238, 124
  %v2386 = vpop.permute.xlu0 %2385
  %2387 = vrot.lane.b32.xlu0 %v2239, 124
  %v2388 = vpop.permute.xlu0 %2387
  %2389 = vrot.lane.b32.xlu0 %v2240, 124
  %v2390 = vpop.permute.xlu0 %2389
  %2391 = vrot.lane.b32.xlu0 %v2241, 124
  %v2392 = vpop.permute.xlu0 %2391
  %2393 = vrot.lane.b32.xlu0 %v2242, 124
  %v2394 = vpop.permute.xlu0 %2393
  %2395 = vrot.lane.b32.xlu0 %v2243, 124
  %v2396 = vpop.permute.xlu0 %2395
  %2397 = vrot.lane.b32.xlu0 %v2244, 124
  %v2398 = vpop.permute.xlu0 %2397
  %2399 = vrot.lane.b32.xlu0 %v2245, 124
  %v2400 = vpop.permute.xlu0 %2399
  %2401 = vrot.lane.b32.xlu0 %v2246, 124
  %v2402 = vpop.permute.xlu0 %2401
  %2403 = vrot.lane.b32.xlu0 %v2247, 124
  %v2404 = vpop.permute.xlu0 %2403
  %2405 = vrot.lane.b32.xlu0 %v2248, 124
  %v2406 = vpop.permute.xlu0 %2405
  %2407 = vrot.lane.b32.xlu0 %v2249, 124
  %v2408 = vpop.permute.xlu0 %2407
  %2409 = vrot.lane.b32.xlu0 %v2250, 124
  %v2410 = vpop.permute.xlu0 %2409
  %2411 = vrot.lane.b32.xlu0 %v2251, 124
  %v2412 = vpop.permute.xlu0 %2411
  %2413 = vrot.lane.b32.xlu0 %v2252, 124
  %v2414 = vpop.permute.xlu0 %2413
  %2415 = vrot.lane.b32.xlu0 %v2253, 124
  %v2416 = vpop.permute.xlu0 %2415
  %2417 = vrot.lane.b32.xlu0 %v2254, 124
  %v2418 = vpop.permute.xlu0 %2417
  %2419 = vrot.lane.b32.xlu0 %v2255, 124
  %v2420 = vpop.permute.xlu0 %2419
  %2421 = vrot.lane.b32.xlu0 %v2256, 124
  %v2422 = vpop.permute.xlu0 %2421
  %2423 = vrot.lane.b32.xlu0 %v2257, 124
  %v2424 = vpop.permute.xlu0 %2423
  %2425 = vrot.lane.b32.xlu0 %v2258, 124
  %v2426 = vpop.permute.xlu0 %2425
  %2427 = vrot.lane.b32.xlu0 %v2259, 124
  %v2428 = vpop.permute.xlu0 %2427
  %2429 = vrot.lane.b32.xlu0 %v2260, 124
  %v2430 = vpop.permute.xlu0 %2429
  %2431 = vrot.lane.b32.xlu0 %v2261, 124
  %v2432 = vpop.permute.xlu0 %2431
  %2433 = vrot.lane.b32.xlu0 %v2262, 124
  %v2434 = vpop.permute.xlu0 %2433
  %2435 = vrot.lane.b32.xlu0 %v2263, 124
  %v2436 = vpop.permute.xlu0 %2435
  %2437 = vrot.lane.b32.xlu0 %v2264, 124
  %v2438 = vpop.permute.xlu0 %2437
  %2439 = vrot.lane.b32.xlu0 %v2265, 124
  %v2440 = vpop.permute.xlu0 %2439
  %2441 = vrot.lane.b32.xlu0 %v2266, 124
  %v2442 = vpop.permute.xlu0 %2441
  %2443 = vrot.lane.b32.xlu0 %v2267, 124
  %v2444 = vpop.permute.xlu0 %2443
  %2445 = vrot.lane.b32.xlu0 %v2268, 124
  %v2446 = vpop.permute.xlu0 %2445
  %2447 = vrot.lane.b32.xlu0 %v2269, 124
  %v2448 = vpop.permute.xlu0 %2447
  %2449 = vrot.lane.b32.xlu0 %v2270, 124
  %v2450 = vpop.permute.xlu0 %2449
  %2451 = vrot.lane.b32.xlu0 %v2271, 124
  %v2452 = vpop.permute.xlu0 %2451
  %2453 = vrot.lane.b32.xlu0 %v2272, 124
  %v2454 = vpop.permute.xlu0 %2453
  %2455 = vrot.lane.b32.xlu0 %v2273, 124
  %v2456 = vpop.permute.xlu0 %2455
  %2457 = vrot.lane.b32.xlu0 %v2274, 124
  %v2458 = vpop.permute.xlu0 %2457
  %2459 = vrot.lane.b32.xlu0 %v2275, 124
  %v2460 = vpop.permute.xlu0 %2459
  %2461 = vrot.lane.b32.xlu0 %v2276, 124
  %v2462 = vpop.permute.xlu0 %2461
  %2463 = vrot.lane.b32.xlu0 %v2277, 124
  %v2464 = vpop.permute.xlu0 %2463
  %2465 = vrot.lane.b32.xlu0 %v2278, 124
  %v2466 = vpop.permute.xlu0 %2465
  %2467 = vrot.lane.b32.xlu0 %v2279, 124
  %v2468 = vpop.permute.xlu0 %2467
  %2469 = vrot.lane.b32.xlu0 %v2280, 124
  %v2470 = vpop.permute.xlu0 %2469
  %2471 = vrot.lane.b32.xlu0 %v2281, 124
  %v2472 = vpop.permute.xlu0 %2471
  %2473 = vrot.lane.b32.xlu0 %v2282, 124
  %v2474 = vpop.permute.xlu0 %2473
  %v2539 = vadd.f32 %v2027, %v2348
  %v2540 = vadd.f32 %v2028, %v2350
  %v2541 = vadd.f32 %v2029, %v2352
  %v2542 = vadd.f32 %v2030, %v2354
  %v2543 = vadd.f32 %v2031, %v2356
  %v2544 = vadd.f32 %v2032, %v2358
  %v2545 = vadd.f32 %v2033, %v2360
  %v2546 = vadd.f32 %v2034, %v2362
  %v2547 = vadd.f32 %v2035, %v2364
  %v2548 = vadd.f32 %v2036, %v2366
  %v2549 = vadd.f32 %v2037, %v2368
  %v2550 = vadd.f32 %v2038, %v2370
  %v2551 = vadd.f32 %v2039, %v2372
  %v2552 = vadd.f32 %v2040, %v2374
  %v2553 = vadd.f32 %v2041, %v2376
  %v2554 = vadd.f32 %v2042, %v2378
  %v2555 = vadd.f32 %v2043, %v2380
  %v2556 = vadd.f32 %v2044, %v2382
  %v2557 = vadd.f32 %v2045, %v2384
  %v2558 = vadd.f32 %v2046, %v2386
  %v2559 = vadd.f32 %v2047, %v2388
  %v2560 = vadd.f32 %v2048, %v2390
  %v2561 = vadd.f32 %v2049, %v2392
  %v2562 = vadd.f32 %v2050, %v2394
  %v2563 = vadd.f32 %v2051, %v2396
  %v2564 = vadd.f32 %v2052, %v2398
  %v2565 = vadd.f32 %v2053, %v2400
  %v2566 = vadd.f32 %v2054, %v2402
  %v2567 = vadd.f32 %v2055, %v2404
  %v2568 = vadd.f32 %v2056, %v2406
  %v2569 = vadd.f32 %v2057, %v2408
  %v2570 = vadd.f32 %v2058, %v2410
  %v2571 = vadd.f32 %v2059, %v2412
  %v2572 = vadd.f32 %v2060, %v2414
  %v2573 = vadd.f32 %v2061, %v2416
  %v2574 = vadd.f32 %v2062, %v2418
  %v2575 = vadd.f32 %v2063, %v2420
  %v2576 = vadd.f32 %v2064, %v2422
  %v2577 = vadd.f32 %v2065, %v2424
  %v2578 = vadd.f32 %v2066, %v2426
  %v2579 = vadd.f32 %v2067, %v2428
  %v2580 = vadd.f32 %v2068, %v2430
  %v2581 = vadd.f32 %v2069, %v2432
  %v2582 = vadd.f32 %v2070, %v2434
  %v2583 = vadd.f32 %v2071, %v2436
  %v2584 = vadd.f32 %v2072, %v2438
  %v2585 = vadd.f32 %v2073, %v2440
  %v2586 = vadd.f32 %v2074, %v2442
  %v2587 = vadd.f32 %v2075, %v2444
  %v2588 = vadd.f32 %v2076, %v2446
  %v2589 = vadd.f32 %v2077, %v2448
  %v2590 = vadd.f32 %v2078, %v2450
  %v2591 = vadd.f32 %v2079, %v2452
  %v2592 = vadd.f32 %v2080, %v2454
  %v2593 = vadd.f32 %v2081, %v2456
  %v2594 = vadd.f32 %v2082, %v2458
  %v2595 = vadd.f32 %v2083, %v2460
  %v2596 = vadd.f32 %v2084, %v2462
  %v2597 = vadd.f32 %v2085, %v2464
  %v2598 = vadd.f32 %v2086, %v2466
  %v2599 = vadd.f32 %v2087, %v2468
  %v2600 = vadd.f32 %v2088, %v2470
  %v2601 = vadd.f32 %v2089, %v2472
  %v2602 = vadd.f32 %v2090, %v2474
  %v2603 = vtanh.pop %v2539
  %v2604 = vtanh.pop %v2540
  %v2605 = vtanh.pop %v2541
  %v2606 = vtanh.pop %v2542
  %v2607 = vtanh.pop %v2543
  %v2608 = vtanh.pop %v2544
  %v2609 = vtanh.pop %v2545
  %v2610 = vtanh.pop %v2546
  %v2611 = vtanh.pop %v2547
  %v2612 = vtanh.pop %v2548
  %v2613 = vtanh.pop %v2549
  %v2614 = vtanh.pop %v2550
  %v2615 = vtanh.pop %v2551
  %v2616 = vtanh.pop %v2552
  %v2617 = vtanh.pop %v2553
  %v2618 = vtanh.pop %v2554
  %v2619 = vtanh.pop %v2555
  %v2620 = vtanh.pop %v2556
  %v2621 = vtanh.pop %v2557
  %v2622 = vtanh.pop %v2558
  %v2623 = vtanh.pop %v2559
  %v2624 = vtanh.pop %v2560
  %v2625 = vtanh.pop %v2561
  %v2626 = vtanh.pop %v2562
  %v2627 = vtanh.pop %v2563
  %v2628 = vtanh.pop %v2564
  %v2629 = vtanh.pop %v2565
  %v2630 = vtanh.pop %v2566
  %v2631 = vtanh.pop %v2567
  %v2632 = vtanh.pop %v2568
  %v2633 = vtanh.pop %v2569
  %v2634 = vtanh.pop %v2570
  %v2635 = vtanh.pop %v2571
  %v2636 = vtanh.pop %v2572
  %v2637 = vtanh.pop %v2573
  %v2638 = vtanh.pop %v2574
  %v2639 = vtanh.pop %v2575
  %v2640 = vtanh.pop %v2576
  %v2641 = vtanh.pop %v2577
  %v2642 = vtanh.pop %v2578
  %v2643 = vtanh.pop %v2579
  %v2644 = vtanh.pop %v2580
  %v2645 = vtanh.pop %v2581
  %v2646 = vtanh.pop %v2582
  %v2647 = vtanh.pop %v2583
  %v2648 = vtanh.pop %v2584
  %v2649 = vtanh.pop %v2585
  %v2650 = vtanh.pop %v2586
  %v2651 = vtanh.pop %v2587
  %v2652 = vtanh.pop %v2588
  %v2653 = vtanh.pop %v2589
  %v2654 = vtanh.pop %v2590
  %v2655 = vtanh.pop %v2591
  %v2656 = vtanh.pop %v2592
  %v2657 = vtanh.pop %v2593
  %v2658 = vtanh.pop %v2594
  %v2659 = vtanh.pop %v2595
  %v2660 = vtanh.pop %v2596
  %v2661 = vtanh.pop %v2597
  %v2662 = vtanh.pop %v2598
  %v2663 = vtanh.pop %v2599
  %v2664 = vtanh.pop %v2600
  %v2665 = vtanh.pop %v2601
  %v2666 = vtanh.pop %v2602
  %vm2667 = vcmask 130048
  %2668 = vst.msk [vmem:[%s3] sm:$0xff] %vm2667, %v2603
  %2669 = vst.msk [vmem:[%s3 + $0x8] sm:$0xff] %vm2667, %v2604
  %2670 = vst.msk [vmem:[%s3 + $0x10] sm:$0xff] %vm2667, %v2605
  %2671 = vst.msk [vmem:[%s3 + $0x18] sm:$0xff] %vm2667, %v2606
  %2672 = vst.msk [vmem:[%s3 + $0x20] sm:$0xff] %vm2667, %v2607
  %2673 = vst.msk [vmem:[%s3 + $0x28] sm:$0xff] %vm2667, %v2608
  %2674 = vst.msk [vmem:[%s3 + $0x30] sm:$0xff] %vm2667, %v2609
  %2675 = vst.msk [vmem:[%s3 + $0x38] sm:$0xff] %vm2667, %v2610
  %2676 = vst.msk [vmem:[%s3 + $0x40] sm:$0xff] %vm2667, %v2611
  %2677 = vst.msk [vmem:[%s3 + $0x48] sm:$0xff] %vm2667, %v2612
  %2678 = vst.msk [vmem:[%s3 + $0x50] sm:$0xff] %vm2667, %v2613
  %2679 = vst.msk [vmem:[%s3 + $0x58] sm:$0xff] %vm2667, %v2614
  %2680 = vst.msk [vmem:[%s3 + $0x60] sm:$0xff] %vm2667, %v2615
  %2681 = vst.msk [vmem:[%s3 + $0x68] sm:$0xff] %vm2667, %v2616
  %2682 = vst.msk [vmem:[%s3 + $0x70] sm:$0xff] %vm2667, %v2617
  %2683 = vst.msk [vmem:[%s3 + $0x78] sm:$0xff] %vm2667, %v2618
  %2684 = vst.msk [vmem:[%s3 + $0x80] sm:$0xff] %vm2667, %v2619
  %2685 = vst.msk [vmem:[%s3 + $0x88] sm:$0xff] %vm2667, %v2620
  %2686 = vst.msk [vmem:[%s3 + $0x90] sm:$0xff] %vm2667, %v2621
  %2687 = vst.msk [vmem:[%s3 + $0x98] sm:$0xff] %vm2667, %v2622
  %2688 = vst.msk [vmem:[%s3 + $0xa0] sm:$0xff] %vm2667, %v2623
  %2689 = vst.msk [vmem:[%s3 + $0xa8] sm:$0xff] %vm2667, %v2624
  %2690 = vst.msk [vmem:[%s3 + $0xb0] sm:$0xff] %vm2667, %v2625
  %2691 = vst.msk [vmem:[%s3 + $0xb8] sm:$0xff] %vm2667, %v2626
  %2692 = vst.msk [vmem:[%s3 + $0xc0] sm:$0xff] %vm2667, %v2627
  %2693 = vst.msk [vmem:[%s3 + $0xc8] sm:$0xff] %vm2667, %v2628
  %2694 = vst.msk [vmem:[%s3 + $0xd0] sm:$0xff] %vm2667, %v2629
  %2695 = vst.msk [vmem:[%s3 + $0xd8] sm:$0xff] %vm2667, %v2630
  %2696 = vst.msk [vmem:[%s3 + $0xe0] sm:$0xff] %vm2667, %v2631
  %2697 = vst.msk [vmem:[%s3 + $0xe8] sm:$0xff] %vm2667, %v2632
  %2698 = vst.msk [vmem:[%s3 + $0xf0] sm:$0xff] %vm2667, %v2633
  %2699 = vst.msk [vmem:[%s3 + $0xf8] sm:$0xff] %vm2667, %v2634
  %2700 = vst.msk [vmem:[%s3 + $0x100] sm:$0xff] %vm2667, %v2635
  %2701 = vst.msk [vmem:[%s3 + $0x108] sm:$0xff] %vm2667, %v2636
  %2702 = vst.msk [vmem:[%s3 + $0x110] sm:$0xff] %vm2667, %v2637
  %2703 = vst.msk [vmem:[%s3 + $0x118] sm:$0xff] %vm2667, %v2638
  %2704 = vst.msk [vmem:[%s3 + $0x120] sm:$0xff] %vm2667, %v2639
  %2705 = vst.msk [vmem:[%s3 + $0x128] sm:$0xff] %vm2667, %v2640
  %2706 = vst.msk [vmem:[%s3 + $0x130] sm:$0xff] %vm2667, %v2641
  %2707 = vst.msk [vmem:[%s3 + $0x138] sm:$0xff] %vm2667, %v2642
  %2708 = vst.msk [vmem:[%s3 + $0x140] sm:$0xff] %vm2667, %v2643
  %2709 = vst.msk [vmem:[%s3 + $0x148] sm:$0xff] %vm2667, %v2644
  %2710 = vst.msk [vmem:[%s3 + $0x150] sm:$0xff] %vm2667, %v2645
  %2711 = vst.msk [vmem:[%s3 + $0x158] sm:$0xff] %vm2667, %v2646
  %2712 = vst.msk [vmem:[%s3 + $0x160] sm:$0xff] %vm2667, %v2647
  %2713 = vst.msk [vmem:[%s3 + $0x168] sm:$0xff] %vm2667, %v2648
  %2714 = vst.msk [vmem:[%s3 + $0x170] sm:$0xff] %vm2667, %v2649
  %2715 = vst.msk [vmem:[%s3 + $0x178] sm:$0xff] %vm2667, %v2650
  %2716 = vst.msk [vmem:[%s3 + $0x180] sm:$0xff] %vm2667, %v2651
  %2717 = vst.msk [vmem:[%s3 + $0x188] sm:$0xff] %vm2667, %v2652
  %2718 = vst.msk [vmem:[%s3 + $0x190] sm:$0xff] %vm2667, %v2653
  %2719 = vst.msk [vmem:[%s3 + $0x198] sm:$0xff] %vm2667, %v2654
  %2720 = vst.msk [vmem:[%s3 + $0x1a0] sm:$0xff] %vm2667, %v2655
  %2721 = vst.msk [vmem:[%s3 + $0x1a8] sm:$0xff] %vm2667, %v2656
  %2722 = vst.msk [vmem:[%s3 + $0x1b0] sm:$0xff] %vm2667, %v2657
  %2723 = vst.msk [vmem:[%s3 + $0x1b8] sm:$0xff] %vm2667, %v2658
  %2724 = vst.msk [vmem:[%s3 + $0x1c0] sm:$0xff] %vm2667, %v2659
  %2725 = vst.msk [vmem:[%s3 + $0x1c8] sm:$0xff] %vm2667, %v2660
  %2726 = vst.msk [vmem:[%s3 + $0x1d0] sm:$0xff] %vm2667, %v2661
  %2727 = vst.msk [vmem:[%s3 + $0x1d8] sm:$0xff] %vm2667, %v2662
  %2728 = vst.msk [vmem:[%s3 + $0x1e0] sm:$0xff] %vm2667, %v2663
  %2729 = vst.msk [vmem:[%s3 + $0x1e8] sm:$0xff] %vm2667, %v2664
  %2730 = vst.msk [vmem:[%s3 + $0x1f0] sm:$0xff] %vm2667, %v2665
  %2731 = vst.msk [vmem:[%s3 + $0x1f8] sm:$0xff] %vm2667, %v2666
  // Predicated region
  $region14: #{tpu_custom_call.1} parent=0 // pred_check
    _
  $region15: #{tpu_custom_call.1} parent=0 // pred_check_branch
    %2733 = sbr.rel (0) target = $region17
  $region16: #{tpu_custom_call.1} parent=0 // pred_region
    _
  $region17: #{tpu_custom_call.1} parent=0 // pred_fallthru
    _
  // Predicated region
  $region18: #{tpu_custom_call.1} parent=0 // pred_check
    _
  $region19: #{tpu_custom_call.1} parent=0 // pred_check_branch
    %2735 = sbr.rel (0) target = $region21
  $region20: #{tpu_custom_call.1} parent=0 // pred_region
    _
  $region21: #{tpu_custom_call.1} parent=0 // pred_fallthru
    _

</llo_original>
